<compile_context>
chip_gen: v7x
topology: tpu7x:2x2x1
jax: 0.10.0
libtpu: 0.0.40
codegen_flags: <defaults>
</compile_context>

<pallas_src>
import math

import jax
import jax.numpy as jnp
from jax.experimental import pallas as pl
from jax.experimental.pallas import tpu as pltpu

B, S, D = 2, 8, 32          # batch, sequence length, input_dim (d_model)
NH = 4                      # attention heads
HD = D // NH                # per-head dim
HID = 64                    # dim_feedforward
EPS = 1e-5                  # LayerNorm eps (PyTorch default)


def neurallog_kernel(x_ref, wslab_ref, pslab_ref, out_ref, s_sc, attn_sc):
    # ---- unpack the small-parameter slab (f32) -------------------------------
    pslab = pslab_ref[...]                               # (16, 128)
    pe = pslab[:, 0:D]                                   # (B*S, D) positional enc.
    bqkv = pslab[0:1, D:D + 3 * D]                       # (1, 96)  in-proj bias
    b1 = pslab[1:2, D:D + HID]                           # (1, 64)  ff1 bias
    bo = pslab[2:3, D:2 * D]                             # (1, 32)  out-proj bias
    g1 = pslab[3:4, D:2 * D]
    be1 = pslab[4:5, D:2 * D]
    b2 = pslab[5:6, D:2 * D]
    g2 = pslab[6:7, D:2 * D]
    be2 = pslab[7:8, D:2 * D]
    wc = pslab[8:9, D:2 * D]                             # (1, 32)  classifier row
    bc = pslab[9:10, D:D + 1]                            # (1, 1)   classifier bias

    # ---- unpack the weight slab (bf16, MXU operands) --------------------------
    wslab = wslab_ref[...]                               # (32, 256) bf16
    wqkv = wslab[:, 0:3 * D]                             # (32, 96)
    wo = wslab[:, 3 * D:4 * D]                           # (32, 32)
    w1t = wslab[:, 4 * D:4 * D + HID]                    # (32, 64)
    w2a = wslab[:, 4 * D + HID:5 * D + HID]              # (32, 32)  w2.T rows 0:32
    w2b = wslab[:, 5 * D + HID:6 * D + HID]              # (32, 32)  w2.T rows 32:64

    # positional encoding added in-kernel (keeps x + pe off the XLA hot path)
    x = x_ref[...] + pe                                  # (B*S, D) f32

    # ---- fused QKV projection (bf16 in, f32 accumulate) -----------------------
    qkv = jnp.dot(x.astype(jnp.bfloat16), wqkv,
                  preferred_element_type=jnp.float32) + bqkv           # (16, 96)
    qkv_b = qkv.astype(jnp.bfloat16)

    # ---- scores: 8 tiny (8,8) MXU matmuls, sublane-stacked into (64, 8) -------
    scale = 1.0 / math.sqrt(HD)
    for b in range(B):
        r0 = b * S
        for h in range(NH):
            c = h * HD
            qh = qkv_b[r0:r0 + S, c:c + HD]                            # (8, 8)
            kh = qkv_b[r0:r0 + S, D + c:D + c + HD]                    # (8, 8)
            s = jax.lax.dot_general(qh, kh, (((1,), (1,)), ((), ())),
                                    preferred_element_type=jnp.float32)
            i0 = (b * NH + h) * S
            s_sc[i0:i0 + S, :] = s * scale

    # ---- one softmax over the whole stacked block (f32) -----------------------
    s_all = s_sc[...]                                                  # (64, 8)
    s_all = s_all - jnp.max(s_all, axis=-1, keepdims=True)
    e = jnp.exp(s_all)
    p = e * pl.reciprocal(jnp.sum(e, axis=-1, keepdims=True), approx=True)
    p_b = p.astype(jnp.bfloat16)

    # ---- per-head PV + Wo row-slice accumulation (no concats, no out-proj) ----
    for b in range(B):
        r0 = b * S
        acc = jnp.zeros((S, D), jnp.float32)
        for h in range(NH):
            i0 = (b * NH + h) * S
            ph = p_b[i0:i0 + S, :]                                     # (8, 8)
            vh = qkv_b[r0:r0 + S, 2 * D + h * HD:2 * D + (h + 1) * HD]  # (8, 8)
            pv = jnp.dot(ph, vh, preferred_element_type=jnp.float32)   # (8, 8)
            acc = acc + jnp.dot(pv.astype(jnp.bfloat16),
                                wo[h * HD:(h + 1) * HD, :],
                                preferred_element_type=jnp.float32)    # (8, 32)
        attn_sc[r0:r0 + S, :] = acc      # sublane-aligned write

    attn = attn_sc[...] + bo                                           # (16, 32)

    # ---- residual + LayerNorm 1 (post-norm, f32) -------------------------------
    y = x + attn
    mu = jnp.mean(y, axis=-1, keepdims=True)
    var = jnp.mean((y - mu) ** 2, axis=-1, keepdims=True)
    y = (y - mu) * jax.lax.rsqrt(var + EPS) * g1 + be1

    # ---- feed-forward (ReLU), w2 applied as two packed 32x32 halves ------------
    h1 = jnp.maximum(
        jnp.dot(y.astype(jnp.bfloat16), w1t,
                preferred_element_type=jnp.float32) + b1, 0.0)         # (16, 64)
    h1b = h1.astype(jnp.bfloat16)
    ff = (jnp.dot(h1b[:, :D], w2a, preferred_element_type=jnp.float32)
          + jnp.dot(h1b[:, D:], w2b, preferred_element_type=jnp.float32) + b2)

    # ---- residual + LayerNorm 2 -------------------------------------------------
    z = y + ff
    mu2 = jnp.mean(z, axis=-1, keepdims=True)
    var2 = jnp.mean((z - mu2) ** 2, axis=-1, keepdims=True)
    z = (z - mu2) * jax.lax.rsqrt(var2 + EPS) * g2 + be2

    # ---- mean pool over sequence + classifier (VPU mul + lane reduce) ----------
    row = jnp.sum(z * wc, axis=-1, keepdims=True)                      # (16, 1)
    logit_rows = [jnp.sum(row[b * S:(b + 1) * S, :], axis=0, keepdims=True)
                  * (1.0 / S) for b in range(B)]
    out_ref[...] = (jnp.concatenate(logit_rows, axis=0) + bc).astype(out_ref.dtype)


def prepare_params(params, pe):
    """One-time (hoisted) packing of all weights/vectors into two VMEM slabs."""
    (w_in, b_in, w_out, b_out, g1, be1, w1, b1, w2, b2, g2, be2, wc, bc) = params

    # weight slab (32, 256) bf16: [Wqkv(96) | Wo(32) | W1t(64) | W2t_top(32) | W2t_bot(32)]
    w2t = w2.T                                                           # (HID, D)
    wslab = jnp.concatenate(
        [w_in.T, w_out.T, w1.T, w2t[:D, :], w2t[D:, :]],
        axis=1).astype(jnp.bfloat16)                                     # (32, 256)

    # parameter slab (16, 128) f32:
    #   cols 0:32            -> positional encoding, tiled over batch (16 rows)
    #   row 0, cols 32:128   -> in-proj bias (96)
    #   row 1, cols 32:96    -> ff1 bias (64)
    #   rows 2:10, cols 32:64-> [b_out, g1, be1, b2, g2, be2, wc, bc@lane0]
    pslab = jnp.zeros((B * S, 4 * D), jnp.float32)
    pslab = pslab.at[:, :D].set(jnp.tile(pe, (B, 1)))
    pslab = pslab.at[0, D:D + 3 * D].set(b_in)
    pslab = pslab.at[1, D:D + HID].set(b1)
    bc_row = jnp.zeros((D,), jnp.float32).at[0].set(bc[0])
    vec_rows = jnp.stack([b_out, g1, be1, b2, g2, be2, wc.reshape(D), bc_row], 0)
    pslab = pslab.at[2:10, D:2 * D].set(vec_rows)
    return wslab, pslab


@jax.jit
def neurallog_forward(x, wslab, pslab):
    xf = x.astype(jnp.float32).reshape(B * S, D)
    # Single invocation, no grid: total footprint ~40 KB << VMEM on v5e/v6e/v7x,
    # so there is no per-step pipeline / DMA-descriptor overhead and only three
    # lane-dense operands to DMA.
    return pl.pallas_call(
        neurallog_kernel,
        out_shape=jax.ShapeDtypeStruct((B, 1), jnp.float32),
        scratch_shapes=[
            pltpu.VMEM((B * NH * S, S), jnp.float32),   # stacked attention scores
            pltpu.VMEM((B * S, D), jnp.float32),        # attention output accumulator
        ],
    )(xf, wslab, pslab)


def reference(x, pe, params):
    """Pure-JAX f32 reference mirroring the PyTorch forward (eval mode)."""
    w_in, b_in, w_out, b_out, g1, be1, w1, b1, w2, b2, g2, be2, wc, bc = params
    h = x + pe[None]
    qkv = h @ w_in.T + b_in
    q, k, v = jnp.split(qkv, 3, axis=-1)

    def split_heads(t):
        return t.reshape(B, S, NH, HD).transpose(0, 2, 1, 3)

    qh, kh, vh = map(split_heads, (q, k, v))
    s = jnp.einsum('bhqe,bhke->bhqk', qh, kh) / math.sqrt(HD)
    p = jax.nn.softmax(s, axis=-1)
    o = jnp.einsum('bhqk,bhke->bhqe', p, vh).transpose(0, 2, 1, 3).reshape(B, S, D)
    o = o @ w_out.T + b_out

    def ln(t, g, bta):
        mu = t.mean(-1, keepdims=True)
        var = ((t - mu) ** 2).mean(-1, keepdims=True)
        return (t - mu) / jnp.sqrt(var + EPS) * g + bta

    y = ln(h + o, g1, be1)
    ff = jnp.maximum(y @ w1.T + b1, 0.0) @ w2.T + b2
    z = ln(y + ff, g2, be2)
    pooled = z.mean(axis=1)
    return pooled @ wc.T + bc


def make_params(key):
    ks = jax.random.split(key, 8)
    scale = 0.1
    w_in = scale * jax.random.normal(ks[0], (3 * D, D), jnp.float32)
    b_in = scale * jax.random.normal(ks[1], (3 * D,), jnp.float32)
    w_out = scale * jax.random.normal(ks[2], (D, D), jnp.float32)
    b_out = scale * jax.random.normal(ks[3], (D,), jnp.float32)
    g1 = jnp.ones((D,), jnp.float32)
    be1 = jnp.zeros((D,), jnp.float32)
    w1 = scale * jax.random.normal(ks[4], (HID, D), jnp.float32)
    b1 = scale * jax.random.normal(ks[5], (HID,), jnp.float32)
    w2 = scale * jax.random.normal(ks[6], (D, HID), jnp.float32)
    b2 = jnp.zeros((D,), jnp.float32)
    g2 = jnp.ones((D,), jnp.float32)
    be2 = jnp.zeros((D,), jnp.float32)
    wc = scale * jax.random.normal(ks[7], (1, D), jnp.float32)
    bc = jnp.zeros((1,), jnp.float32)
    return (w_in, b_in, w_out, b_out, g1, be1, w1, b1, w2, b2, g2, be2, wc, bc)


def make_pe():
    position = jnp.arange(S, dtype=jnp.float32)[:, None]
    div_term = jnp.exp(jnp.arange(0, D, 2, dtype=jnp.float32)
                       * (-math.log(10000.0) / D))
    pe = jnp.zeros((S, D), jnp.float32)
    pe = pe.at[:, 0::2].set(jnp.sin(position * div_term))
    pe = pe.at[:, 1::2].set(jnp.cos(position * div_term))
    return pe


if __name__ == "__main__":
    key = jax.random.PRNGKey(0)
    kx, kp = jax.random.split(key)
    x = jax.random.normal(kx, (B, S, D), jnp.float32)
    params = make_params(kp)
    pe = make_pe()

    # one-time parameter packing, hoisted out of the per-call hot path
    wslab, pslab = prepare_params(params, pe)

    out = jax.block_until_ready(neurallog_forward(x, wslab, pslab))
    ref = jax.block_until_ready(reference(x, pe, params))

    assert out.shape == (B, 1), out.shape
    # Tolerance relaxed vs. the pure-f32 version: bf16 matmul operands (f32
    # accumulation) plus the EUP approximate softmax reciprocal.
    assert jnp.allclose(out, ref, atol=2e-2, rtol=2e-2), (out, ref)
    print("KERNEL_OK")
</pallas_src>

<mosaic_0001>
module attributes {stable_mosaic.version = 11 : i64} {
  func.func @neurallog_kernel(%arg0: memref<16x32xf32, #tpu.memory_space<vmem>>, %arg1: memref<32x256xbf16, #tpu.memory_space<vmem>>, %arg2: memref<16x128xf32, #tpu.memory_space<vmem>>, %arg3: memref<2x1xf32, #tpu.memory_space<vmem>>, %arg4: memref<64x8xf32, #tpu.memory_space<vmem>>, %arg5: memref<16x32xf32, #tpu.memory_space<vmem>>) attributes {dimension_semantics = [], scalar_prefetch = 0 : i64, scratch_operands = 2 : i64, tpu.core_type = #tpu.core_type<tc>} {
    %c0 = arith.constant 0 : index
    %c0_0 = arith.constant 0 : index
    %0 = vector.load %arg2[%c0, %c0_0] : memref<16x128xf32, #tpu.memory_space<vmem>>, vector<16x128xf32>
    %1 = vector.extract_strided_slice %0 {offsets = [0, 0], sizes = [16, 32], strides = [1, 1]} : vector<16x128xf32> to vector<16x32xf32>
    %2 = vector.extract_strided_slice %0 {offsets = [0, 32], sizes = [1, 96], strides = [1, 1]} : vector<16x128xf32> to vector<1x96xf32>
    %3 = vector.extract_strided_slice %0 {offsets = [1, 32], sizes = [1, 64], strides = [1, 1]} : vector<16x128xf32> to vector<1x64xf32>
    %4 = vector.extract_strided_slice %0 {offsets = [2, 32], sizes = [1, 32], strides = [1, 1]} : vector<16x128xf32> to vector<1x32xf32>
    %5 = vector.extract_strided_slice %0 {offsets = [3, 32], sizes = [1, 32], strides = [1, 1]} : vector<16x128xf32> to vector<1x32xf32>
    %6 = vector.extract_strided_slice %0 {offsets = [4, 32], sizes = [1, 32], strides = [1, 1]} : vector<16x128xf32> to vector<1x32xf32>
    %7 = vector.extract_strided_slice %0 {offsets = [5, 32], sizes = [1, 32], strides = [1, 1]} : vector<16x128xf32> to vector<1x32xf32>
    %8 = vector.extract_strided_slice %0 {offsets = [6, 32], sizes = [1, 32], strides = [1, 1]} : vector<16x128xf32> to vector<1x32xf32>
    %9 = vector.extract_strided_slice %0 {offsets = [7, 32], sizes = [1, 32], strides = [1, 1]} : vector<16x128xf32> to vector<1x32xf32>
    %10 = vector.extract_strided_slice %0 {offsets = [8, 32], sizes = [1, 32], strides = [1, 1]} : vector<16x128xf32> to vector<1x32xf32>
    %11 = vector.extract_strided_slice %0 {offsets = [9, 32], sizes = [1, 1], strides = [1, 1]} : vector<16x128xf32> to vector<1x1xf32>
    %c0_1 = arith.constant 0 : index
    %c0_2 = arith.constant 0 : index
    %12 = vector.load %arg1[%c0_1, %c0_2] : memref<32x256xbf16, #tpu.memory_space<vmem>>, vector<32x256xbf16>
    %13 = vector.extract_strided_slice %12 {offsets = [0, 0], sizes = [32, 96], strides = [1, 1]} : vector<32x256xbf16> to vector<32x96xbf16>
    %14 = vector.extract_strided_slice %12 {offsets = [0, 96], sizes = [32, 32], strides = [1, 1]} : vector<32x256xbf16> to vector<32x32xbf16>
    %15 = vector.extract_strided_slice %12 {offsets = [0, 128], sizes = [32, 64], strides = [1, 1]} : vector<32x256xbf16> to vector<32x64xbf16>
    %16 = vector.extract_strided_slice %12 {offsets = [0, 192], sizes = [32, 32], strides = [1, 1]} : vector<32x256xbf16> to vector<32x32xbf16>
    %17 = vector.extract_strided_slice %12 {offsets = [0, 224], sizes = [32, 32], strides = [1, 1]} : vector<32x256xbf16> to vector<32x32xbf16>
    %c0_3 = arith.constant 0 : index
    %c0_4 = arith.constant 0 : index
    %18 = vector.load %arg0[%c0_3, %c0_4] : memref<16x32xf32, #tpu.memory_space<vmem>>, vector<16x32xf32>
    %19 = arith.addf %18, %1 : vector<16x32xf32>
    %20 = arith.truncf %19 : vector<16x32xf32> to vector<16x32xbf16>
    %cst = arith.constant dense<0.000000e+00> : vector<16x96xf32>
    %21 = tpu.matmul %20, %13, %cst {dimension_numbers = #tpu.dot_dimension_numbers<[1], [0], [0], [1], [0, 0, 1, 1], [], []>} : vector<16x32xbf16>, vector<32x96xbf16>, vector<16x96xf32> -> vector<16x96xf32>
    %22 = vector.broadcast %2 : vector<1x96xf32> to vector<16x96xf32>
    %23 = arith.addf %21, %22 : vector<16x96xf32>
    %24 = arith.truncf %23 : vector<16x96xf32> to vector<16x96xbf16>
    %25 = vector.extract_strided_slice %24 {offsets = [0, 0], sizes = [8, 8], strides = [1, 1]} : vector<16x96xbf16> to vector<8x8xbf16>
    %26 = vector.extract_strided_slice %24 {offsets = [0, 32], sizes = [8, 8], strides = [1, 1]} : vector<16x96xbf16> to vector<8x8xbf16>
    %cst_5 = arith.constant dense<0.000000e+00> : vector<8x8xf32>
    %27 = tpu.matmul %25, %26, %cst_5 {dimension_numbers = #tpu.dot_dimension_numbers<[1], [1], [0], [0], [0, 0, 1, 0], [], []>} : vector<8x8xbf16>, vector<8x8xbf16>, vector<8x8xf32> -> vector<8x8xf32>
    %cst_6 = arith.constant 0.353553385 : f32
    %28 = vector.broadcast %cst_6 : f32 to vector<8x8xf32>
    %29 = arith.mulf %27, %28 : vector<8x8xf32>
    %c0_7 = arith.constant 0 : index
    %c0_8 = arith.constant 0 : index
    %30 = vector.load %arg4[%c0_7, %c0_8] : memref<64x8xf32, #tpu.memory_space<vmem>>, vector<8x8xf32>
    tpu.vector_store %arg4[%c0_7, %c0_8], %29 {strides = array<i32>} : memref<64x8xf32, #tpu.memory_space<vmem>>, vector<8x8xf32>,
    %31 = vector.extract_strided_slice %24 {offsets = [0, 8], sizes = [8, 8], strides = [1, 1]} : vector<16x96xbf16> to vector<8x8xbf16>
    %32 = vector.extract_strided_slice %24 {offsets = [0, 40], sizes = [8, 8], strides = [1, 1]} : vector<16x96xbf16> to vector<8x8xbf16>
    %cst_9 = arith.constant dense<0.000000e+00> : vector<8x8xf32>
    %33 = tpu.matmul %31, %32, %cst_9 {dimension_numbers = #tpu.dot_dimension_numbers<[1], [1], [0], [0], [0, 0, 1, 0], [], []>} : vector<8x8xbf16>, vector<8x8xbf16>, vector<8x8xf32> -> vector<8x8xf32>
    %cst_10 = arith.constant 0.353553385 : f32
    %34 = vector.broadcast %cst_10 : f32 to vector<8x8xf32>
    %35 = arith.mulf %33, %34 : vector<8x8xf32>
    %c8 = arith.constant 8 : index
    %c0_11 = arith.constant 0 : index
    %36 = vector.load %arg4[%c8, %c0_11] : memref<64x8xf32, #tpu.memory_space<vmem>>, vector<8x8xf32>
    tpu.vector_store %arg4[%c8, %c0_11], %35 {strides = array<i32>} : memref<64x8xf32, #tpu.memory_space<vmem>>, vector<8x8xf32>,
    %37 = vector.extract_strided_slice %24 {offsets = [0, 16], sizes = [8, 8], strides = [1, 1]} : vector<16x96xbf16> to vector<8x8xbf16>
    %38 = vector.extract_strided_slice %24 {offsets = [0, 48], sizes = [8, 8], strides = [1, 1]} : vector<16x96xbf16> to vector<8x8xbf16>
    %cst_12 = arith.constant dense<0.000000e+00> : vector<8x8xf32>
    %39 = tpu.matmul %37, %38, %cst_12 {dimension_numbers = #tpu.dot_dimension_numbers<[1], [1], [0], [0], [0, 0, 1, 0], [], []>} : vector<8x8xbf16>, vector<8x8xbf16>, vector<8x8xf32> -> vector<8x8xf32>
    %cst_13 = arith.constant 0.353553385 : f32
    %40 = vector.broadcast %cst_13 : f32 to vector<8x8xf32>
    %41 = arith.mulf %39, %40 : vector<8x8xf32>
    %c16 = arith.constant 16 : index
    %c0_14 = arith.constant 0 : index
    %42 = vector.load %arg4[%c16, %c0_14] : memref<64x8xf32, #tpu.memory_space<vmem>>, vector<8x8xf32>
    tpu.vector_store %arg4[%c16, %c0_14], %41 {strides = array<i32>} : memref<64x8xf32, #tpu.memory_space<vmem>>, vector<8x8xf32>,
    %43 = vector.extract_strided_slice %24 {offsets = [0, 24], sizes = [8, 8], strides = [1, 1]} : vector<16x96xbf16> to vector<8x8xbf16>
    %44 = vector.extract_strided_slice %24 {offsets = [0, 56], sizes = [8, 8], strides = [1, 1]} : vector<16x96xbf16> to vector<8x8xbf16>
    %cst_15 = arith.constant dense<0.000000e+00> : vector<8x8xf32>
    %45 = tpu.matmul %43, %44, %cst_15 {dimension_numbers = #tpu.dot_dimension_numbers<[1], [1], [0], [0], [0, 0, 1, 0], [], []>} : vector<8x8xbf16>, vector<8x8xbf16>, vector<8x8xf32> -> vector<8x8xf32>
    %cst_16 = arith.constant 0.353553385 : f32
    %46 = vector.broadcast %cst_16 : f32 to vector<8x8xf32>
    %47 = arith.mulf %45, %46 : vector<8x8xf32>
    %c24 = arith.constant 24 : index
    %c0_17 = arith.constant 0 : index
    %48 = vector.load %arg4[%c24, %c0_17] : memref<64x8xf32, #tpu.memory_space<vmem>>, vector<8x8xf32>
    tpu.vector_store %arg4[%c24, %c0_17], %47 {strides = array<i32>} : memref<64x8xf32, #tpu.memory_space<vmem>>, vector<8x8xf32>,
    %49 = vector.extract_strided_slice %24 {offsets = [8, 0], sizes = [8, 8], strides = [1, 1]} : vector<16x96xbf16> to vector<8x8xbf16>
    %50 = vector.extract_strided_slice %24 {offsets = [8, 32], sizes = [8, 8], strides = [1, 1]} : vector<16x96xbf16> to vector<8x8xbf16>
    %cst_18 = arith.constant dense<0.000000e+00> : vector<8x8xf32>
    %51 = tpu.matmul %49, %50, %cst_18 {dimension_numbers = #tpu.dot_dimension_numbers<[1], [1], [0], [0], [0, 0, 1, 0], [], []>} : vector<8x8xbf16>, vector<8x8xbf16>, vector<8x8xf32> -> vector<8x8xf32>
    %cst_19 = arith.constant 0.353553385 : f32
    %52 = vector.broadcast %cst_19 : f32 to vector<8x8xf32>
    %53 = arith.mulf %51, %52 : vector<8x8xf32>
    %c32 = arith.constant 32 : index
    %c0_20 = arith.constant 0 : index
    %54 = vector.load %arg4[%c32, %c0_20] : memref<64x8xf32, #tpu.memory_space<vmem>>, vector<8x8xf32>
    tpu.vector_store %arg4[%c32, %c0_20], %53 {strides = array<i32>} : memref<64x8xf32, #tpu.memory_space<vmem>>, vector<8x8xf32>,
    %55 = vector.extract_strided_slice %24 {offsets = [8, 8], sizes = [8, 8], strides = [1, 1]} : vector<16x96xbf16> to vector<8x8xbf16>
    %56 = vector.extract_strided_slice %24 {offsets = [8, 40], sizes = [8, 8], strides = [1, 1]} : vector<16x96xbf16> to vector<8x8xbf16>
    %cst_21 = arith.constant dense<0.000000e+00> : vector<8x8xf32>
    %57 = tpu.matmul %55, %56, %cst_21 {dimension_numbers = #tpu.dot_dimension_numbers<[1], [1], [0], [0], [0, 0, 1, 0], [], []>} : vector<8x8xbf16>, vector<8x8xbf16>, vector<8x8xf32> -> vector<8x8xf32>
    %cst_22 = arith.constant 0.353553385 : f32
    %58 = vector.broadcast %cst_22 : f32 to vector<8x8xf32>
    %59 = arith.mulf %57, %58 : vector<8x8xf32>
    %c40 = arith.constant 40 : index
    %c0_23 = arith.constant 0 : index
    %60 = vector.load %arg4[%c40, %c0_23] : memref<64x8xf32, #tpu.memory_space<vmem>>, vector<8x8xf32>
    tpu.vector_store %arg4[%c40, %c0_23], %59 {strides = array<i32>} : memref<64x8xf32, #tpu.memory_space<vmem>>, vector<8x8xf32>,
    %61 = vector.extract_strided_slice %24 {offsets = [8, 16], sizes = [8, 8], strides = [1, 1]} : vector<16x96xbf16> to vector<8x8xbf16>
    %62 = vector.extract_strided_slice %24 {offsets = [8, 48], sizes = [8, 8], strides = [1, 1]} : vector<16x96xbf16> to vector<8x8xbf16>
    %cst_24 = arith.constant dense<0.000000e+00> : vector<8x8xf32>
    %63 = tpu.matmul %61, %62, %cst_24 {dimension_numbers = #tpu.dot_dimension_numbers<[1], [1], [0], [0], [0, 0, 1, 0], [], []>} : vector<8x8xbf16>, vector<8x8xbf16>, vector<8x8xf32> -> vector<8x8xf32>
    %cst_25 = arith.constant 0.353553385 : f32
    %64 = vector.broadcast %cst_25 : f32 to vector<8x8xf32>
    %65 = arith.mulf %63, %64 : vector<8x8xf32>
    %c48 = arith.constant 48 : index
    %c0_26 = arith.constant 0 : index
    %66 = vector.load %arg4[%c48, %c0_26] : memref<64x8xf32, #tpu.memory_space<vmem>>, vector<8x8xf32>
    tpu.vector_store %arg4[%c48, %c0_26], %65 {strides = array<i32>} : memref<64x8xf32, #tpu.memory_space<vmem>>, vector<8x8xf32>,
    %67 = vector.extract_strided_slice %24 {offsets = [8, 24], sizes = [8, 8], strides = [1, 1]} : vector<16x96xbf16> to vector<8x8xbf16>
    %68 = vector.extract_strided_slice %24 {offsets = [8, 56], sizes = [8, 8], strides = [1, 1]} : vector<16x96xbf16> to vector<8x8xbf16>
    %cst_27 = arith.constant dense<0.000000e+00> : vector<8x8xf32>
    %69 = tpu.matmul %67, %68, %cst_27 {dimension_numbers = #tpu.dot_dimension_numbers<[1], [1], [0], [0], [0, 0, 1, 0], [], []>} : vector<8x8xbf16>, vector<8x8xbf16>, vector<8x8xf32> -> vector<8x8xf32>
    %cst_28 = arith.constant 0.353553385 : f32
    %70 = vector.broadcast %cst_28 : f32 to vector<8x8xf32>
    %71 = arith.mulf %69, %70 : vector<8x8xf32>
    %c56 = arith.constant 56 : index
    %c0_29 = arith.constant 0 : index
    %72 = vector.load %arg4[%c56, %c0_29] : memref<64x8xf32, #tpu.memory_space<vmem>>, vector<8x8xf32>
    tpu.vector_store %arg4[%c56, %c0_29], %71 {strides = array<i32>} : memref<64x8xf32, #tpu.memory_space<vmem>>, vector<8x8xf32>,
    %c0_30 = arith.constant 0 : index
    %c0_31 = arith.constant 0 : index
    %73 = vector.load %arg4[%c0_30, %c0_31] : memref<64x8xf32, #tpu.memory_space<vmem>>, vector<64x8xf32>
    %cst_32 = arith.constant dense<0xFF800000> : vector<64xf32>
    %74 = vector.multi_reduction <maximumf>, %73, %cst_32 [1] : vector<64x8xf32> to vector<64xf32>
    %75 = vector.shape_cast %74 : vector<64xf32> to vector<64x1xf32>
    %76 = vector.broadcast %75 : vector<64x1xf32> to vector<64x8xf32>
    %77 = arith.subf %73, %76 : vector<64x8xf32>
    %78 = math.exp %77 : vector<64x8xf32>
    %cst_33 = arith.constant dense<0.000000e+00> : vector<64xf32>
    %79 = vector.multi_reduction <add>, %78, %cst_33 [1] : vector<64x8xf32> to vector<64xf32>
    %80 = vector.shape_cast %79 : vector<64xf32> to vector<64x1xf32>
    %81 = tpu.reciprocal %80 {approx = true} : vector<64x1xf32> -> vector<64x1xf32>
    %82 = vector.broadcast %81 : vector<64x1xf32> to vector<64x8xf32>
    %83 = arith.mulf %78, %82 : vector<64x8xf32>
    %84 = arith.truncf %83 : vector<64x8xf32> to vector<64x8xbf16>
    %cst_34 = arith.constant 0.000000e+00 : f32
    %85 = vector.broadcast %cst_34 : f32 to vector<8x32xf32>
    %86 = vector.extract_strided_slice %84 {offsets = [0, 0], sizes = [8, 8], strides = [1, 1]} : vector<64x8xbf16> to vector<8x8xbf16>
    %87 = vector.extract_strided_slice %24 {offsets = [0, 64], sizes = [8, 8], strides = [1, 1]} : vector<16x96xbf16> to vector<8x8xbf16>
    %cst_35 = arith.constant dense<0.000000e+00> : vector<8x8xf32>
    %88 = tpu.matmul %86, %87, %cst_35 {dimension_numbers = #tpu.dot_dimension_numbers<[1], [0], [0], [1], [0, 0, 1, 1], [], []>} : vector<8x8xbf16>, vector<8x8xbf16>, vector<8x8xf32> -> vector<8x8xf32>
    %89 = arith.truncf %88 : vector<8x8xf32> to vector<8x8xbf16>
    %90 = vector.extract_strided_slice %14 {offsets = [0, 0], sizes = [8, 32], strides = [1, 1]} : vector<32x32xbf16> to vector<8x32xbf16>
    %cst_36 = arith.constant dense<0.000000e+00> : vector<8x32xf32>
    %91 = tpu.matmul %89, %90, %cst_36 {dimension_numbers = #tpu.dot_dimension_numbers<[1], [0], [0], [1], [0, 0, 1, 1], [], []>} : vector<8x8xbf16>, vector<8x32xbf16>, vector<8x32xf32> -> vector<8x32xf32>
    %92 = arith.addf %85, %91 : vector<8x32xf32>
    %93 = vector.extract_strided_slice %84 {offsets = [8, 0], sizes = [8, 8], strides = [1, 1]} : vector<64x8xbf16> to vector<8x8xbf16>
    %94 = vector.extract_strided_slice %24 {offsets = [0, 72], sizes = [8, 8], strides = [1, 1]} : vector<16x96xbf16> to vector<8x8xbf16>
    %cst_37 = arith.constant dense<0.000000e+00> : vector<8x8xf32>
    %95 = tpu.matmul %93, %94, %cst_37 {dimension_numbers = #tpu.dot_dimension_numbers<[1], [0], [0], [1], [0, 0, 1, 1], [], []>} : vector<8x8xbf16>, vector<8x8xbf16>, vector<8x8xf32> -> vector<8x8xf32>
    %96 = arith.truncf %95 : vector<8x8xf32> to vector<8x8xbf16>
    %97 = vector.extract_strided_slice %14 {offsets = [8, 0], sizes = [8, 32], strides = [1, 1]} : vector<32x32xbf16> to vector<8x32xbf16>
    %cst_38 = arith.constant dense<0.000000e+00> : vector<8x32xf32>
    %98 = tpu.matmul %96, %97, %cst_38 {dimension_numbers = #tpu.dot_dimension_numbers<[1], [0], [0], [1], [0, 0, 1, 1], [], []>} : vector<8x8xbf16>, vector<8x32xbf16>, vector<8x32xf32> -> vector<8x32xf32>
    %99 = arith.addf %92, %98 : vector<8x32xf32>
    %100 = vector.extract_strided_slice %84 {offsets = [16, 0], sizes = [8, 8], strides = [1, 1]} : vector<64x8xbf16> to vector<8x8xbf16>
    %101 = vector.extract_strided_slice %24 {offsets = [0, 80], sizes = [8, 8], strides = [1, 1]} : vector<16x96xbf16> to vector<8x8xbf16>
    %cst_39 = arith.constant dense<0.000000e+00> : vector<8x8xf32>
    %102 = tpu.matmul %100, %101, %cst_39 {dimension_numbers = #tpu.dot_dimension_numbers<[1], [0], [0], [1], [0, 0, 1, 1], [], []>} : vector<8x8xbf16>, vector<8x8xbf16>, vector<8x8xf32> -> vector<8x8xf32>
    %103 = arith.truncf %102 : vector<8x8xf32> to vector<8x8xbf16>
    %104 = vector.extract_strided_slice %14 {offsets = [16, 0], sizes = [8, 32], strides = [1, 1]} : vector<32x32xbf16> to vector<8x32xbf16>
    %cst_40 = arith.constant dense<0.000000e+00> : vector<8x32xf32>
    %105 = tpu.matmul %103, %104, %cst_40 {dimension_numbers = #tpu.dot_dimension_numbers<[1], [0], [0], [1], [0, 0, 1, 1], [], []>} : vector<8x8xbf16>, vector<8x32xbf16>, vector<8x32xf32> -> vector<8x32xf32>
    %106 = arith.addf %99, %105 : vector<8x32xf32>
    %107 = vector.extract_strided_slice %84 {offsets = [24, 0], sizes = [8, 8], strides = [1, 1]} : vector<64x8xbf16> to vector<8x8xbf16>
    %108 = vector.extract_strided_slice %24 {offsets = [0, 88], sizes = [8, 8], strides = [1, 1]} : vector<16x96xbf16> to vector<8x8xbf16>
    %cst_41 = arith.constant dense<0.000000e+00> : vector<8x8xf32>
    %109 = tpu.matmul %107, %108, %cst_41 {dimension_numbers = #tpu.dot_dimension_numbers<[1], [0], [0], [1], [0, 0, 1, 1], [], []>} : vector<8x8xbf16>, vector<8x8xbf16>, vector<8x8xf32> -> vector<8x8xf32>
    %110 = arith.truncf %109 : vector<8x8xf32> to vector<8x8xbf16>
    %111 = vector.extract_strided_slice %14 {offsets = [24, 0], sizes = [8, 32], strides = [1, 1]} : vector<32x32xbf16> to vector<8x32xbf16>
    %cst_42 = arith.constant dense<0.000000e+00> : vector<8x32xf32>
    %112 = tpu.matmul %110, %111, %cst_42 {dimension_numbers = #tpu.dot_dimension_numbers<[1], [0], [0], [1], [0, 0, 1, 1], [], []>} : vector<8x8xbf16>, vector<8x32xbf16>, vector<8x32xf32> -> vector<8x32xf32>
    %113 = arith.addf %106, %112 : vector<8x32xf32>
    %c0_43 = arith.constant 0 : index
    %c0_44 = arith.constant 0 : index
    %114 = vector.load %arg5[%c0_43, %c0_44] : memref<16x32xf32, #tpu.memory_space<vmem>>, vector<8x32xf32>
    tpu.vector_store %arg5[%c0_43, %c0_44], %113 {strides = array<i32>} : memref<16x32xf32, #tpu.memory_space<vmem>>, vector<8x32xf32>,
    %cst_45 = arith.constant 0.000000e+00 : f32
    %115 = vector.broadcast %cst_45 : f32 to vector<8x32xf32>
    %116 = vector.extract_strided_slice %84 {offsets = [32, 0], sizes = [8, 8], strides = [1, 1]} : vector<64x8xbf16> to vector<8x8xbf16>
    %117 = vector.extract_strided_slice %24 {offsets = [8, 64], sizes = [8, 8], strides = [1, 1]} : vector<16x96xbf16> to vector<8x8xbf16>
    %cst_46 = arith.constant dense<0.000000e+00> : vector<8x8xf32>
    %118 = tpu.matmul %116, %117, %cst_46 {dimension_numbers = #tpu.dot_dimension_numbers<[1], [0], [0], [1], [0, 0, 1, 1], [], []>} : vector<8x8xbf16>, vector<8x8xbf16>, vector<8x8xf32> -> vector<8x8xf32>
    %119 = arith.truncf %118 : vector<8x8xf32> to vector<8x8xbf16>
    %120 = vector.extract_strided_slice %14 {offsets = [0, 0], sizes = [8, 32], strides = [1, 1]} : vector<32x32xbf16> to vector<8x32xbf16>
    %cst_47 = arith.constant dense<0.000000e+00> : vector<8x32xf32>
    %121 = tpu.matmul %119, %120, %cst_47 {dimension_numbers = #tpu.dot_dimension_numbers<[1], [0], [0], [1], [0, 0, 1, 1], [], []>} : vector<8x8xbf16>, vector<8x32xbf16>, vector<8x32xf32> -> vector<8x32xf32>
    %122 = arith.addf %115, %121 : vector<8x32xf32>
    %123 = vector.extract_strided_slice %84 {offsets = [40, 0], sizes = [8, 8], strides = [1, 1]} : vector<64x8xbf16> to vector<8x8xbf16>
    %124 = vector.extract_strided_slice %24 {offsets = [8, 72], sizes = [8, 8], strides = [1, 1]} : vector<16x96xbf16> to vector<8x8xbf16>
    %cst_48 = arith.constant dense<0.000000e+00> : vector<8x8xf32>
    %125 = tpu.matmul %123, %124, %cst_48 {dimension_numbers = #tpu.dot_dimension_numbers<[1], [0], [0], [1], [0, 0, 1, 1], [], []>} : vector<8x8xbf16>, vector<8x8xbf16>, vector<8x8xf32> -> vector<8x8xf32>
    %126 = arith.truncf %125 : vector<8x8xf32> to vector<8x8xbf16>
    %127 = vector.extract_strided_slice %14 {offsets = [8, 0], sizes = [8, 32], strides = [1, 1]} : vector<32x32xbf16> to vector<8x32xbf16>
    %cst_49 = arith.constant dense<0.000000e+00> : vector<8x32xf32>
    %128 = tpu.matmul %126, %127, %cst_49 {dimension_numbers = #tpu.dot_dimension_numbers<[1], [0], [0], [1], [0, 0, 1, 1], [], []>} : vector<8x8xbf16>, vector<8x32xbf16>, vector<8x32xf32> -> vector<8x32xf32>
    %129 = arith.addf %122, %128 : vector<8x32xf32>
    %130 = vector.extract_strided_slice %84 {offsets = [48, 0], sizes = [8, 8], strides = [1, 1]} : vector<64x8xbf16> to vector<8x8xbf16>
    %131 = vector.extract_strided_slice %24 {offsets = [8, 80], sizes = [8, 8], strides = [1, 1]} : vector<16x96xbf16> to vector<8x8xbf16>
    %cst_50 = arith.constant dense<0.000000e+00> : vector<8x8xf32>
    %132 = tpu.matmul %130, %131, %cst_50 {dimension_numbers = #tpu.dot_dimension_numbers<[1], [0], [0], [1], [0, 0, 1, 1], [], []>} : vector<8x8xbf16>, vector<8x8xbf16>, vector<8x8xf32> -> vector<8x8xf32>
    %133 = arith.truncf %132 : vector<8x8xf32> to vector<8x8xbf16>
    %134 = vector.extract_strided_slice %14 {offsets = [16, 0], sizes = [8, 32], strides = [1, 1]} : vector<32x32xbf16> to vector<8x32xbf16>
    %cst_51 = arith.constant dense<0.000000e+00> : vector<8x32xf32>
    %135 = tpu.matmul %133, %134, %cst_51 {dimension_numbers = #tpu.dot_dimension_numbers<[1], [0], [0], [1], [0, 0, 1, 1], [], []>} : vector<8x8xbf16>, vector<8x32xbf16>, vector<8x32xf32> -> vector<8x32xf32>
    %136 = arith.addf %129, %135 : vector<8x32xf32>
    %137 = vector.extract_strided_slice %84 {offsets = [56, 0], sizes = [8, 8], strides = [1, 1]} : vector<64x8xbf16> to vector<8x8xbf16>
    %138 = vector.extract_strided_slice %24 {offsets = [8, 88], sizes = [8, 8], strides = [1, 1]} : vector<16x96xbf16> to vector<8x8xbf16>
    %cst_52 = arith.constant dense<0.000000e+00> : vector<8x8xf32>
    %139 = tpu.matmul %137, %138, %cst_52 {dimension_numbers = #tpu.dot_dimension_numbers<[1], [0], [0], [1], [0, 0, 1, 1], [], []>} : vector<8x8xbf16>, vector<8x8xbf16>, vector<8x8xf32> -> vector<8x8xf32>
    %140 = arith.truncf %139 : vector<8x8xf32> to vector<8x8xbf16>
    %141 = vector.extract_strided_slice %14 {offsets = [24, 0], sizes = [8, 32], strides = [1, 1]} : vector<32x32xbf16> to vector<8x32xbf16>
    %cst_53 = arith.constant dense<0.000000e+00> : vector<8x32xf32>
    %142 = tpu.matmul %140, %141, %cst_53 {dimension_numbers = #tpu.dot_dimension_numbers<[1], [0], [0], [1], [0, 0, 1, 1], [], []>} : vector<8x8xbf16>, vector<8x32xbf16>, vector<8x32xf32> -> vector<8x32xf32>
    %143 = arith.addf %136, %142 : vector<8x32xf32>
    %c8_54 = arith.constant 8 : index
    %c0_55 = arith.constant 0 : index
    %144 = vector.load %arg5[%c8_54, %c0_55] : memref<16x32xf32, #tpu.memory_space<vmem>>, vector<8x32xf32>
    tpu.vector_store %arg5[%c8_54, %c0_55], %143 {strides = array<i32>} : memref<16x32xf32, #tpu.memory_space<vmem>>, vector<8x32xf32>,
    %c0_56 = arith.constant 0 : index
    %c0_57 = arith.constant 0 : index
    %145 = vector.load %arg5[%c0_56, %c0_57] : memref<16x32xf32, #tpu.memory_space<vmem>>, vector<16x32xf32>
    %146 = vector.broadcast %4 : vector<1x32xf32> to vector<16x32xf32>
    %147 = arith.addf %145, %146 : vector<16x32xf32>
    %148 = arith.addf %19, %147 : vector<16x32xf32>
    %cst_58 = arith.constant dense<0.000000e+00> : vector<16xf32>
    %149 = vector.multi_reduction <add>, %148, %cst_58 [1] : vector<16x32xf32> to vector<16xf32>
    %150 = vector.shape_cast %149 : vector<16xf32> to vector<16x1xf32>
    %cst_59 = arith.constant 3.200000e+01 : f32
    %151 = vector.broadcast %cst_59 : f32 to vector<16x1xf32>
    %152 = arith.divf %150, %151 : vector<16x1xf32>
    %153 = vector.broadcast %152 : vector<16x1xf32> to vector<16x32xf32>
    %154 = arith.subf %148, %153 : vector<16x32xf32>
    %155 = arith.mulf %154, %154 : vector<16x32xf32>
    %cst_60 = arith.constant dense<0.000000e+00> : vector<16xf32>
    %156 = vector.multi_reduction <add>, %155, %cst_60 [1] : vector<16x32xf32> to vector<16xf32>
    %157 = vector.shape_cast %156 : vector<16xf32> to vector<16x1xf32>
    %cst_61 = arith.constant 3.200000e+01 : f32
    %158 = vector.broadcast %cst_61 : f32 to vector<16x1xf32>
    %159 = arith.divf %157, %158 : vector<16x1xf32>
    %160 = vector.broadcast %152 : vector<16x1xf32> to vector<16x32xf32>
    %161 = arith.subf %148, %160 : vector<16x32xf32>
    %cst_62 = arith.constant 9.99999974E-6 : f32
    %162 = vector.broadcast %cst_62 : f32 to vector<16x1xf32>
    %163 = arith.addf %159, %162 : vector<16x1xf32>
    %164 = math.rsqrt %163 : vector<16x1xf32>
    %165 = vector.broadcast %164 : vector<16x1xf32> to vector<16x32xf32>
    %166 = arith.mulf %161, %165 : vector<16x32xf32>
    %167 = vector.broadcast %5 : vector<1x32xf32> to vector<16x32xf32>
    %168 = arith.mulf %166, %167 : vector<16x32xf32>
    %169 = vector.broadcast %6 : vector<1x32xf32> to vector<16x32xf32>
    %170 = arith.addf %168, %169 : vector<16x32xf32>
    %171 = arith.truncf %170 : vector<16x32xf32> to vector<16x32xbf16>
    %cst_63 = arith.constant dense<0.000000e+00> : vector<16x64xf32>
    %172 = tpu.matmul %171, %15, %cst_63 {dimension_numbers = #tpu.dot_dimension_numbers<[1], [0], [0], [1], [0, 0, 1, 1], [], []>} : vector<16x32xbf16>, vector<32x64xbf16>, vector<16x64xf32> -> vector<16x64xf32>
    %173 = vector.broadcast %3 : vector<1x64xf32> to vector<16x64xf32>
    %174 = arith.addf %172, %173 : vector<16x64xf32>
    %cst_64 = arith.constant 0.000000e+00 : f32
    %175 = vector.broadcast %cst_64 : f32 to vector<16x64xf32>
    %176 = arith.maximumf %174, %175 : vector<16x64xf32>
    %177 = arith.truncf %176 : vector<16x64xf32> to vector<16x64xbf16>
    %178 = vector.extract_strided_slice %177 {offsets = [0, 0], sizes = [16, 32], strides = [1, 1]} : vector<16x64xbf16> to vector<16x32xbf16>
    %cst_65 = arith.constant dense<0.000000e+00> : vector<16x32xf32>
    %179 = tpu.matmul %178, %16, %cst_65 {dimension_numbers = #tpu.dot_dimension_numbers<[1], [0], [0], [1], [0, 0, 1, 1], [], []>} : vector<16x32xbf16>, vector<32x32xbf16>, vector<16x32xf32> -> vector<16x32xf32>
    %180 = vector.extract_strided_slice %177 {offsets = [0, 32], sizes = [16, 32], strides = [1, 1]} : vector<16x64xbf16> to vector<16x32xbf16>
    %cst_66 = arith.constant dense<0.000000e+00> : vector<16x32xf32>
    %181 = tpu.matmul %180, %17, %cst_66 {dimension_numbers = #tpu.dot_dimension_numbers<[1], [0], [0], [1], [0, 0, 1, 1], [], []>} : vector<16x32xbf16>, vector<32x32xbf16>, vector<16x32xf32> -> vector<16x32xf32>
    %182 = arith.addf %179, %181 : vector<16x32xf32>
    %183 = vector.broadcast %7 : vector<1x32xf32> to vector<16x32xf32>
    %184 = arith.addf %182, %183 : vector<16x32xf32>
    %185 = arith.addf %170, %184 : vector<16x32xf32>
    %cst_67 = arith.constant dense<0.000000e+00> : vector<16xf32>
    %186 = vector.multi_reduction <add>, %185, %cst_67 [1] : vector<16x32xf32> to vector<16xf32>
    %187 = vector.shape_cast %186 : vector<16xf32> to vector<16x1xf32>
    %cst_68 = arith.constant 3.200000e+01 : f32
    %188 = vector.broadcast %cst_68 : f32 to vector<16x1xf32>
    %189 = arith.divf %187, %188 : vector<16x1xf32>
    %190 = vector.broadcast %189 : vector<16x1xf32> to vector<16x32xf32>
    %191 = arith.subf %185, %190 : vector<16x32xf32>
    %192 = arith.mulf %191, %191 : vector<16x32xf32>
    %cst_69 = arith.constant dense<0.000000e+00> : vector<16xf32>
    %193 = vector.multi_reduction <add>, %192, %cst_69 [1] : vector<16x32xf32> to vector<16xf32>
    %194 = vector.shape_cast %193 : vector<16xf32> to vector<16x1xf32>
    %cst_70 = arith.constant 3.200000e+01 : f32
    %195 = vector.broadcast %cst_70 : f32 to vector<16x1xf32>
    %196 = arith.divf %194, %195 : vector<16x1xf32>
    %197 = vector.broadcast %189 : vector<16x1xf32> to vector<16x32xf32>
    %198 = arith.subf %185, %197 : vector<16x32xf32>
    %cst_71 = arith.constant 9.99999974E-6 : f32
    %199 = vector.broadcast %cst_71 : f32 to vector<16x1xf32>
    %200 = arith.addf %196, %199 : vector<16x1xf32>
    %201 = math.rsqrt %200 : vector<16x1xf32>
    %202 = vector.broadcast %201 : vector<16x1xf32> to vector<16x32xf32>
    %203 = arith.mulf %198, %202 : vector<16x32xf32>
    %204 = vector.broadcast %8 : vector<1x32xf32> to vector<16x32xf32>
    %205 = arith.mulf %203, %204 : vector<16x32xf32>
    %206 = vector.broadcast %9 : vector<1x32xf32> to vector<16x32xf32>
    %207 = arith.addf %205, %206 : vector<16x32xf32>
    %208 = vector.broadcast %10 : vector<1x32xf32> to vector<16x32xf32>
    %209 = arith.mulf %207, %208 : vector<16x32xf32>
    %cst_72 = arith.constant dense<0.000000e+00> : vector<16xf32>
    %210 = vector.multi_reduction <add>, %209, %cst_72 [1] : vector<16x32xf32> to vector<16xf32>
    %211 = vector.shape_cast %210 : vector<16xf32> to vector<16x1xf32>
    %212 = vector.extract_strided_slice %211 {offsets = [0, 0], sizes = [8, 1], strides = [1, 1]} : vector<16x1xf32> to vector<8x1xf32>
    %cst_73 = arith.constant dense<0.000000e+00> : vector<1xf32>
    %213 = vector.multi_reduction <add>, %212, %cst_73 [0] : vector<8x1xf32> to vector<1xf32>
    %214 = vector.shape_cast %213 : vector<1xf32> to vector<1x1xf32>
    %cst_74 = arith.constant 1.250000e-01 : f32
    %215 = vector.broadcast %cst_74 : f32 to vector<1x1xf32>
    %216 = arith.mulf %214, %215 : vector<1x1xf32>
    %217 = vector.extract_strided_slice %211 {offsets = [8, 0], sizes = [8, 1], strides = [1, 1]} : vector<16x1xf32> to vector<8x1xf32>
    %cst_75 = arith.constant dense<0.000000e+00> : vector<1xf32>
    %218 = vector.multi_reduction <add>, %217, %cst_75 [0] : vector<8x1xf32> to vector<1xf32>
    %219 = vector.shape_cast %218 : vector<1xf32> to vector<1x1xf32>
    %cst_76 = arith.constant 1.250000e-01 : f32
    %220 = vector.broadcast %cst_76 : f32 to vector<1x1xf32>
    %221 = arith.mulf %219, %220 : vector<1x1xf32>
    %222 = tpu.concatenate %216, %221 in 0 : vector<1x1xf32>, vector<1x1xf32> -> vector<2x1xf32>
    %223 = vector.broadcast %11 : vector<1x1xf32> to vector<2x1xf32>
    %224 = arith.addf %222, %223 : vector<2x1xf32>
    %c0_77 = arith.constant 0 : index
    %c0_78 = arith.constant 0 : index
    %225 = vector.load %arg3[%c0_77, %c0_78] : memref<2x1xf32, #tpu.memory_space<vmem>>, vector<2x1xf32>
    tpu.vector_store %arg3[%c0_77, %c0_78], %224 {strides = array<i32>} : memref<2x1xf32, #tpu.memory_space<vmem>>, vector<2x1xf32>,
    return
  }
}

</mosaic_0001>

<llo_original>
// kernel: neurallog_forward.1
$region0: #{neurallog_forward.1}
  #allocation0 [shape = 'u32[]', space=smem, size = 0x4, offset = 0x4, fixed_abs, tag = 'smem constant byte address 0x4 - core index']
  #allocation1 [shape = 'u32[144,128]{1,0:T(1,128)}', space=vmem, size = 0x12000, scoped, tag = 'internal scratch']
  #allocation2 [shape = 'f32[64,8]{1,0:T(8,128)}', space=vmem, size = 0x8000, scoped, tag = 'scratch operand']
  #allocation3 [shape = 'f32[16,32]{1,0:T(8,128)}', space=vmem, size = 0x2000, scoped, tag = 'scratch operand']
  %s0 = inlined_call_operand.hbm [shape: f32[16,32], index: 0, kind: input, shape index: {}]
  %s1 = inlined_call_operand.hbm [shape: bf16[32,256], index: 1, kind: input, shape index: {}]
  %s2 = inlined_call_operand.hbm [shape: f32[16,128], index: 2, kind: input, shape index: {}]
  %s3 = inlined_call_operand.vmem [shape: f32[2,1], index: 3, kind: output, shape index: {}]
  %s4 = sld [smem:[#allocation0]]
  $region34: #{neurallog_forward.1} parent=0
    _
  %s6 = ssub.s32 1, %s4
  %s7 = scalar_select 0, %s6, %s4
  $region1: #{neurallog_forward.1} parent=0
    #allocation4 [shape = 'u8[8192]{0}', space=vmem, size = 0x2000, scoped, tag = 'input window, operand 0, single buffered']
    #allocation5 [shape = 's32[1]{0}', space=sflag, size = 0x4, scoped, tag = 'scoped memory for neurallog_forward.1']
    #allocation6 [shape = 'u8[16384]{0}', space=vmem, size = 0x4000, scoped, tag = 'input window, operand 1, single buffered']
    #allocation7 [shape = 's32[1]{0}', space=sflag, size = 0x4, scoped, tag = 'scoped memory for neurallog_forward.1']
    #allocation8 [shape = 'u8[8192]{0}', space=vmem, size = 0x2000, scoped, tag = 'input window, operand 2, single buffered']
    %8 = vsyncpa [#allocation5], 0
    %9 = vsyncpa [#allocation7], 0
    // Predicated region
    $region2: #{neurallog_forward.1} parent=1 // pred_check
      _
    $region3: #{neurallog_forward.1} parent=1 // pred_check_branch
      %11 = sbr.rel (0) target = $region5
    $region4: #{neurallog_forward.1} parent=1 // pred_region
      %s13 = ssub.s32 256, 256
      %14 = vsyncadd [#allocation5], %s13
      %s15 = sshll.u32 [#allocation4], 4
      %s16 = int_to_ptr.vmem [resolvable:$true] %s15
      %21 = dma.hbm_to_vmem [thread:$0]  %s0, 256, %s16, [#allocation5], 128, 128, 8
    $region5: #{neurallog_forward.1} parent=1 // pred_fallthru
      _
    // Predicated region
    $region6: #{neurallog_forward.1} parent=1 // pred_check
      _
    $region7: #{neurallog_forward.1} parent=1 // pred_check_branch
      %23 = sbr.rel (0) target = $region9
    $region8: #{neurallog_forward.1} parent=1 // pred_region
      %s25 = ssub.s32 512, 512
      %26 = vsyncadd [#allocation7], %s25
      %s27 = sshll.u32 [#allocation6], 4
      %s28 = int_to_ptr.vmem [resolvable:$true] %s27
      %33 = dma.hbm_to_vmem [thread:$0]  %s1, 512, %s28, [#allocation7], 128, 128, 8
    $region9: #{neurallog_forward.1} parent=1 // pred_fallthru
      _
    // Predicated region
    $region10: #{neurallog_forward.1} parent=1 // pred_check
      _
    $region11: #{neurallog_forward.1} parent=1 // pred_check_branch
      %35 = sbr.rel (0) target = $region13
    $region12: #{neurallog_forward.1} parent=1 // pred_region
      %s37 = ssub.s32 256, 256
      %38 = vsyncadd [#allocation7], %s37
      %s39 = sshll.u32 [#allocation8], 4
      %s40 = int_to_ptr.vmem [resolvable:$true] %s39
      %45 = dma.hbm_to_vmem [thread:$0]  %s2, 256, %s40, [#allocation7], 128, 128, 8
    $region13: #{neurallog_forward.1} parent=1 // pred_fallthru
      _
    // Predicated region
    $region14: #{neurallog_forward.1} parent=1 // pred_check
      _
    $region15: #{neurallog_forward.1} parent=1 // pred_check_branch
      %47 = sbr.rel (0) target = $region17
    $region16: #{neurallog_forward.1} parent=1 // pred_region
      %48 = dma.done [#allocation5], 256
    $region17: #{neurallog_forward.1} parent=1 // pred_fallthru
      _
    // Predicated region
    $region18: #{neurallog_forward.1} parent=1 // pred_check
      _
    $region19: #{neurallog_forward.1} parent=1 // pred_check_branch
      %50 = sbr.rel (0) target = $region21
    $region20: #{neurallog_forward.1} parent=1 // pred_region
      %51 = dma.done [#allocation7], 512
    $region21: #{neurallog_forward.1} parent=1 // pred_fallthru
      _
    // Predicated region
    $region22: #{neurallog_forward.1} parent=1 // pred_check
      _
    $region23: #{neurallog_forward.1} parent=1 // pred_check_branch
      %53 = sbr.rel (0) target = $region25
    $region24: #{neurallog_forward.1} parent=1 // pred_region
      %54 = dma.done [#allocation7], 256
    $region25: #{neurallog_forward.1} parent=1 // pred_fallthru
      _
    %v56 = vld [vmem:[#allocation8] sm:$0xff]
    %v57 = vld [vmem:[#allocation8 + $0x8] sm:$0xff]
    %v58 = vld [vmem:[#allocation6] sm:$0xff]
    %v59 = vld [vmem:[#allocation6 + $0x8] sm:$0xff]
    %v60 = vld [vmem:[#allocation6 + $0x10] sm:$0xff]
    %v61 = vld [vmem:[#allocation6 + $0x18] sm:$0xff]
    %v62 = vld [vmem:[#allocation4] sm:$0xff]
    %v63 = vld [vmem:[#allocation4 + $0x8] sm:$0xff]
    %v64 = vadd.f32 %v62, %v56
    %v65 = vadd.f32 %v63, %v57
    %v66 = vpack.c.bf16 %v65, %v64
    %v67 = vlaneseq
    %v68 = vshrl.u32 %v67, 7
    %v69 = vsub.s32 0, %v68
    %v70 = vrot.slane %v56, %v69
    %v75 = vunpack.c.l.b16 %v58
    %v76 = vunpack.c.l.b16 %v59
    %v77 = vunpack.c.l.b16 %v60
    %v78 = vunpack.c.l.b16 %v61
    %v79 = vpack.c.b16 %v76, %v75
    %v80 = vpack.c.b16 %v78, %v77
    %84 = vrot.lane.b32.xlu0 %v70, 96
    %v85 = vpop.permute.xlu0 %84
    %vm87 = vcmask 261120
    %v89 = vsel %vm87, %v66, 0
    %91 = vmatprep.subr.bf16.mxu0 0
    %92 = vmatpush1.bf16.msra.mxu0 %v79
    %93 = vmatprep.subr.bf16.mxu0 0
    %94 = vmatpush1.bf16.msra.mxu0 %v80
    %95 = vmatprep.subr.bf16.mxu0 0
    %96 = vmatpush1.bf16.msra.mxu0 0
    %97 = vmatprep.subr.bf16.mxu0 0
    %98 = vmatpush1.bf16.msra.mxu0 0
    %99 = vmatprep.subr.bf16.mxu0 0
    %100 = vmatpush1.bf16.msra.mxu0 0
    %101 = vmatprep.subr.bf16.mxu0 0
    %102 = vmatpush1.bf16.msra.mxu0 0
    %103 = vmatprep.subr.bf16.mxu0 0
    %104 = vmatpush1.bf16.msra.mxu0 0
    %105 = vmatprep.subr.bf16.mxu0 0
    %106 = vmatpush1.bf16.msra.mxu0 0
    %107 = vmatprep.subr.bf16.mxu0 0
    %108 = vmatpush1.bf16.msra.mxu0 0
    %109 = vmatprep.subr.bf16.mxu0 0
    %110 = vmatpush1.bf16.msra.mxu0 0
    %111 = vmatprep.subr.bf16.mxu0 0
    %112 = vmatpush1.bf16.msra.mxu0 0
    %113 = vmatprep.subr.bf16.mxu0 0
    %114 = vmatpush1.bf16.msra.mxu0 0
    %115 = vmatprep.subr.bf16.mxu0 0
    %116 = vmatpush1.bf16.msra.mxu0 0
    %117 = vmatprep.subr.bf16.mxu0 0
    %118 = vmatpush1.bf16.msra.mxu0 0
    %119 = vmatprep.subr.bf16.mxu0 0
    %120 = vmatpush1.bf16.msra.mxu0 0
    %121 = vmatprep.subr.bf16.mxu0 0
    %122 = vmatpush1.bf16.msra.mxu0 0
    %123 = vmatprep.mubr.bf16.mxu0 0
    %124 = vmatmul.mubr.bf16.gmra.mrb[0].mxu0 %v89
    %v125 = vpop.f32.mrb[0].mxu0
    %v126 = vadd.f32 %v85, %v125
    %v127 = vpop.f32.mrb[0].mxu0
    %v128 = vpop.f32.mrb[0].mxu0
    %v129 = vadd.f32 %v85, %v128
    %v130 = vpop.f32.mrb[0].mxu0
    %131 = vdwg.mxu0
    %v132 = vpack.c.bf16 %v129, %v126
    %134 = vrot.lane.b32.xlu0 %v132, 96
    %v135 = vpop.permute.xlu0 %134
    %vm136 = vcmask 64512
    %v138 = vsel %vm136, %v132, 0
    %v141 = vsel %vm136, %v135, 0
    %143 = vmatprep.subr.bf16.mxu0 0
    %144 = vmatpush1.bf16.xpose.msra.mxu0 %v141
    %145 = vmatprep.subr.bf16.mxu0 0
    %146 = vmatpush1.bf16.xpose.msra.mxu0 0
    %147 = vmatprep.subr.bf16.mxu0 0
    %148 = vmatpush1.bf16.xpose.msra.mxu0 0
    %149 = vmatprep.subr.bf16.mxu0 0
    %150 = vmatpush1.bf16.xpose.msra.mxu0 0
    %151 = vmatprep.subr.bf16.mxu0 0
    %152 = vmatpush1.bf16.xpose.msra.mxu0 0
    %153 = vmatprep.subr.bf16.mxu0 0
    %154 = vmatpush1.bf16.xpose.msra.mxu0 0
    %155 = vmatprep.subr.bf16.mxu0 0
    %156 = vmatpush1.bf16.xpose.msra.mxu0 0
    %157 = vmatprep.subr.bf16.mxu0 0
    %158 = vmatpush1.bf16.xpose.msra.mxu0 0
    %159 = vmatprep.subr.bf16.mxu0 0
    %160 = vmatpush1.bf16.xpose.msra.mxu0 0
    %161 = vmatprep.subr.bf16.mxu0 0
    %162 = vmatpush1.bf16.xpose.msra.mxu0 0
    %163 = vmatprep.subr.bf16.mxu0 0
    %164 = vmatpush1.bf16.xpose.msra.mxu0 0
    %165 = vmatprep.subr.bf16.mxu0 0
    %166 = vmatpush1.bf16.xpose.msra.mxu0 0
    %167 = vmatprep.subr.bf16.mxu0 0
    %168 = vmatpush1.bf16.xpose.msra.mxu0 0
    %169 = vmatprep.subr.bf16.mxu0 0
    %170 = vmatpush1.bf16.xpose.msra.mxu0 0
    %171 = vmatprep.subr.bf16.mxu0 0
    %172 = vmatpush1.bf16.xpose.msra.mxu0 0
    %173 = vmatprep.subr.bf16.mxu0 0
    %174 = vmatpush1.bf16.xpose.msra.mxu0 0
    %175 = vmatprep.mubr.bf16.mxu0 0
    %176 = vmatmul.mubr.bf16.gmra.mrb[0].mxu0 %v138
    %v177 = vpop.f32.mrb[0].mxu0
    %v178 = vadd.f32 0.0, %v177
    %v179 = vpop.f32.mrb[0].mxu0
    %v180 = vpop.f32.mrb[0].mxu0
    %v181 = vpop.f32.mrb[0].mxu0
    %182 = vdwg.mxu0
    %v183 = vmul.f32 %v178, 0.35355338
    %184 = vst.msk [vmem:[#allocation2] sm:$0xff] %vm136, %v183
    %185 = vrot.lane.b32.xlu0 %v132, 120
    %v186 = vpop.permute.xlu0 %185
    %187 = vrot.lane.b32.xlu0 %v132, 88
    %v188 = vpop.permute.xlu0 %187
    %v190 = vsel %vm136, %v186, 0
    %v193 = vsel %vm136, %v188, 0
    %195 = vmatprep.subr.bf16.mxu0 0
    %196 = vmatpush1.bf16.xpose.msra.mxu0 %v193
    %197 = vmatprep.subr.bf16.mxu0 0
    %198 = vmatpush1.bf16.xpose.msra.mxu0 0
    %199 = vmatprep.subr.bf16.mxu0 0
    %200 = vmatpush1.bf16.xpose.msra.mxu0 0
    %201 = vmatprep.subr.bf16.mxu0 0
    %202 = vmatpush1.bf16.xpose.msra.mxu0 0
    %203 = vmatprep.subr.bf16.mxu0 0
    %204 = vmatpush1.bf16.xpose.msra.mxu0 0
    %205 = vmatprep.subr.bf16.mxu0 0
    %206 = vmatpush1.bf16.xpose.msra.mxu0 0
    %207 = vmatprep.subr.bf16.mxu0 0
    %208 = vmatpush1.bf16.xpose.msra.mxu0 0
    %209 = vmatprep.subr.bf16.mxu0 0
    %210 = vmatpush1.bf16.xpose.msra.mxu0 0
    %211 = vmatprep.subr.bf16.mxu0 0
    %212 = vmatpush1.bf16.xpose.msra.mxu0 0
    %213 = vmatprep.subr.bf16.mxu0 0
    %214 = vmatpush1.bf16.xpose.msra.mxu0 0
    %215 = vmatprep.subr.bf16.mxu0 0
    %216 = vmatpush1.bf16.xpose.msra.mxu0 0
    %217 = vmatprep.subr.bf16.mxu0 0
    %218 = vmatpush1.bf16.xpose.msra.mxu0 0
    %219 = vmatprep.subr.bf16.mxu0 0
    %220 = vmatpush1.bf16.xpose.msra.mxu0 0
    %221 = vmatprep.subr.bf16.mxu0 0
    %222 = vmatpush1.bf16.xpose.msra.mxu0 0
    %223 = vmatprep.subr.bf16.mxu0 0
    %224 = vmatpush1.bf16.xpose.msra.mxu0 0
    %225 = vmatprep.subr.bf16.mxu0 0
    %226 = vmatpush1.bf16.xpose.msra.mxu0 0
    %227 = vmatprep.mubr.bf16.mxu0 0
    %228 = vmatmul.mubr.bf16.gmra.mrb[0].mxu0 %v190
    %v229 = vpop.f32.mrb[0].mxu0
    %v230 = vadd.f32 0.0, %v229
    %v231 = vpop.f32.mrb[0].mxu0
    %v232 = vpop.f32.mrb[0].mxu0
    %v233 = vpop.f32.mrb[0].mxu0
    %234 = vdwg.mxu0
    %v235 = vmul.f32 %v230, 0.35355338
    %236 = vst.msk [vmem:[#allocation2 + $0x8] sm:$0xff] %vm136, %v235
    %237 = vrot.lane.b32.xlu0 %v132, 112
    %v238 = vpop.permute.xlu0 %237
    %239 = vrot.lane.b32.xlu0 %v132, 80
    %v240 = vpop.permute.xlu0 %239
    %v242 = vsel %vm136, %v238, 0
    %v245 = vsel %vm136, %v240, 0
    %247 = vmatprep.subr.bf16.mxu0 0
    %248 = vmatpush1.bf16.xpose.msra.mxu0 %v245
    %249 = vmatprep.subr.bf16.mxu0 0
    %250 = vmatpush1.bf16.xpose.msra.mxu0 0
    %251 = vmatprep.subr.bf16.mxu0 0
    %252 = vmatpush1.bf16.xpose.msra.mxu0 0
    %253 = vmatprep.subr.bf16.mxu0 0
    %254 = vmatpush1.bf16.xpose.msra.mxu0 0
    %255 = vmatprep.subr.bf16.mxu0 0
    %256 = vmatpush1.bf16.xpose.msra.mxu0 0
    %257 = vmatprep.subr.bf16.mxu0 0
    %258 = vmatpush1.bf16.xpose.msra.mxu0 0
    %259 = vmatprep.subr.bf16.mxu0 0
    %260 = vmatpush1.bf16.xpose.msra.mxu0 0
    %261 = vmatprep.subr.bf16.mxu0 0
    %262 = vmatpush1.bf16.xpose.msra.mxu0 0
    %263 = vmatprep.subr.bf16.mxu0 0
    %264 = vmatpush1.bf16.xpose.msra.mxu0 0
    %265 = vmatprep.subr.bf16.mxu0 0
    %266 = vmatpush1.bf16.xpose.msra.mxu0 0
    %267 = vmatprep.subr.bf16.mxu0 0
    %268 = vmatpush1.bf16.xpose.msra.mxu0 0
    %269 = vmatprep.subr.bf16.mxu0 0
    %270 = vmatpush1.bf16.xpose.msra.mxu0 0
    %271 = vmatprep.subr.bf16.mxu0 0
    %272 = vmatpush1.bf16.xpose.msra.mxu0 0
    %273 = vmatprep.subr.bf16.mxu0 0
    %274 = vmatpush1.bf16.xpose.msra.mxu0 0
    %275 = vmatprep.subr.bf16.mxu0 0
    %276 = vmatpush1.bf16.xpose.msra.mxu0 0
    %277 = vmatprep.subr.bf16.mxu0 0
    %278 = vmatpush1.bf16.xpose.msra.mxu0 0
    %279 = vmatprep.mubr.bf16.mxu0 0
    %280 = vmatmul.mubr.bf16.gmra.mrb[0].mxu0 %v242
    %v281 = vpop.f32.mrb[0].mxu0
    %v282 = vadd.f32 0.0, %v281
    %v283 = vpop.f32.mrb[0].mxu0
    %v284 = vpop.f32.mrb[0].mxu0
    %v285 = vpop.f32.mrb[0].mxu0
    %286 = vdwg.mxu0
    %v287 = vmul.f32 %v282, 0.35355338
    %288 = vst.msk [vmem:[#allocation2 + $0x10] sm:$0xff] %vm136, %v287
    %289 = vrot.lane.b32.xlu0 %v132, 104
    %v290 = vpop.permute.xlu0 %289
    %291 = vrot.lane.b32.xlu0 %v132, 72
    %v292 = vpop.permute.xlu0 %291
    %v294 = vsel %vm136, %v290, 0
    %v297 = vsel %vm136, %v292, 0
    %299 = vmatprep.subr.bf16.mxu0 0
    %300 = vmatpush1.bf16.xpose.msra.mxu0 %v297
    %301 = vmatprep.subr.bf16.mxu0 0
    %302 = vmatpush1.bf16.xpose.msra.mxu0 0
    %303 = vmatprep.subr.bf16.mxu0 0
    %304 = vmatpush1.bf16.xpose.msra.mxu0 0
    %305 = vmatprep.subr.bf16.mxu0 0
    %306 = vmatpush1.bf16.xpose.msra.mxu0 0
    %307 = vmatprep.subr.bf16.mxu0 0
    %308 = vmatpush1.bf16.xpose.msra.mxu0 0
    %309 = vmatprep.subr.bf16.mxu0 0
    %310 = vmatpush1.bf16.xpose.msra.mxu0 0
    %311 = vmatprep.subr.bf16.mxu0 0
    %312 = vmatpush1.bf16.xpose.msra.mxu0 0
    %313 = vmatprep.subr.bf16.mxu0 0
    %314 = vmatpush1.bf16.xpose.msra.mxu0 0
    %315 = vmatprep.subr.bf16.mxu0 0
    %316 = vmatpush1.bf16.xpose.msra.mxu0 0
    %317 = vmatprep.subr.bf16.mxu0 0
    %318 = vmatpush1.bf16.xpose.msra.mxu0 0
    %319 = vmatprep.subr.bf16.mxu0 0
    %320 = vmatpush1.bf16.xpose.msra.mxu0 0
    %321 = vmatprep.subr.bf16.mxu0 0
    %322 = vmatpush1.bf16.xpose.msra.mxu0 0
    %323 = vmatprep.subr.bf16.mxu0 0
    %324 = vmatpush1.bf16.xpose.msra.mxu0 0
    %325 = vmatprep.subr.bf16.mxu0 0
    %326 = vmatpush1.bf16.xpose.msra.mxu0 0
    %327 = vmatprep.subr.bf16.mxu0 0
    %328 = vmatpush1.bf16.xpose.msra.mxu0 0
    %329 = vmatprep.subr.bf16.mxu0 0
    %330 = vmatpush1.bf16.xpose.msra.mxu0 0
    %331 = vmatprep.mubr.bf16.mxu0 0
    %332 = vmatmul.mubr.bf16.gmra.mrb[0].mxu0 %v294
    %v333 = vpop.f32.mrb[0].mxu0
    %v334 = vadd.f32 0.0, %v333
    %v335 = vpop.f32.mrb[0].mxu0
    %v336 = vpop.f32.mrb[0].mxu0
    %v337 = vpop.f32.mrb[0].mxu0
    %338 = vdwg.mxu0
    %v339 = vmul.f32 %v334, 0.35355338
    %340 = vst.msk [vmem:[#allocation2 + $0x18] sm:$0xff] %vm136, %v339
    %v341 = vrot.slane %v132, 4
    %342 = vrot.lane.b32.xlu0 %v341, 96
    %v343 = vpop.permute.xlu0 %342
    %v345 = vsel %vm136, %v341, 0
    %v348 = vsel %vm136, %v343, 0
    %350 = vmatprep.subr.bf16.mxu0 0
    %351 = vmatpush1.bf16.xpose.msra.mxu0 %v348
    %352 = vmatprep.subr.bf16.mxu0 0
    %353 = vmatpush1.bf16.xpose.msra.mxu0 0
    %354 = vmatprep.subr.bf16.mxu0 0
    %355 = vmatpush1.bf16.xpose.msra.mxu0 0
    %356 = vmatprep.subr.bf16.mxu0 0
    %357 = vmatpush1.bf16.xpose.msra.mxu0 0
    %358 = vmatprep.subr.bf16.mxu0 0
    %359 = vmatpush1.bf16.xpose.msra.mxu0 0
    %360 = vmatprep.subr.bf16.mxu0 0
    %361 = vmatpush1.bf16.xpose.msra.mxu0 0
    %362 = vmatprep.subr.bf16.mxu0 0
    %363 = vmatpush1.bf16.xpose.msra.mxu0 0
    %364 = vmatprep.subr.bf16.mxu0 0
    %365 = vmatpush1.bf16.xpose.msra.mxu0 0
    %366 = vmatprep.subr.bf16.mxu0 0
    %367 = vmatpush1.bf16.xpose.msra.mxu0 0
    %368 = vmatprep.subr.bf16.mxu0 0
    %369 = vmatpush1.bf16.xpose.msra.mxu0 0
    %370 = vmatprep.subr.bf16.mxu0 0
    %371 = vmatpush1.bf16.xpose.msra.mxu0 0
    %372 = vmatprep.subr.bf16.mxu0 0
    %373 = vmatpush1.bf16.xpose.msra.mxu0 0
    %374 = vmatprep.subr.bf16.mxu0 0
    %375 = vmatpush1.bf16.xpose.msra.mxu0 0
    %376 = vmatprep.subr.bf16.mxu0 0
    %377 = vmatpush1.bf16.xpose.msra.mxu0 0
    %378 = vmatprep.subr.bf16.mxu0 0
    %379 = vmatpush1.bf16.xpose.msra.mxu0 0
    %380 = vmatprep.subr.bf16.mxu0 0
    %381 = vmatpush1.bf16.xpose.msra.mxu0 0
    %382 = vmatprep.mubr.bf16.mxu0 0
    %383 = vmatmul.mubr.bf16.gmra.mrb[0].mxu0 %v345
    %v384 = vpop.f32.mrb[0].mxu0
    %v385 = vadd.f32 0.0, %v384
    %v386 = vpop.f32.mrb[0].mxu0
    %v387 = vpop.f32.mrb[0].mxu0
    %v388 = vpop.f32.mrb[0].mxu0
    %389 = vdwg.mxu0
    %v390 = vmul.f32 %v385, 0.35355338
    %391 = vst.msk [vmem:[#allocation2 + $0x20] sm:$0xff] %vm136, %v390
    %392 = vrot.lane.b32.xlu0 %v341, 120
    %v393 = vpop.permute.xlu0 %392
    %394 = vrot.lane.b32.xlu0 %v341, 88
    %v395 = vpop.permute.xlu0 %394
    %v397 = vsel %vm136, %v393, 0
    %v400 = vsel %vm136, %v395, 0
    %402 = vmatprep.subr.bf16.mxu0 0
    %403 = vmatpush1.bf16.xpose.msra.mxu0 %v400
    %404 = vmatprep.subr.bf16.mxu0 0
    %405 = vmatpush1.bf16.xpose.msra.mxu0 0
    %406 = vmatprep.subr.bf16.mxu0 0
    %407 = vmatpush1.bf16.xpose.msra.mxu0 0
    %408 = vmatprep.subr.bf16.mxu0 0
    %409 = vmatpush1.bf16.xpose.msra.mxu0 0
    %410 = vmatprep.subr.bf16.mxu0 0
    %411 = vmatpush1.bf16.xpose.msra.mxu0 0
    %412 = vmatprep.subr.bf16.mxu0 0
    %413 = vmatpush1.bf16.xpose.msra.mxu0 0
    %414 = vmatprep.subr.bf16.mxu0 0
    %415 = vmatpush1.bf16.xpose.msra.mxu0 0
    %416 = vmatprep.subr.bf16.mxu0 0
    %417 = vmatpush1.bf16.xpose.msra.mxu0 0
    %418 = vmatprep.subr.bf16.mxu0 0
    %419 = vmatpush1.bf16.xpose.msra.mxu0 0
    %420 = vmatprep.subr.bf16.mxu0 0
    %421 = vmatpush1.bf16.xpose.msra.mxu0 0
    %422 = vmatprep.subr.bf16.mxu0 0
    %423 = vmatpush1.bf16.xpose.msra.mxu0 0
    %424 = vmatprep.subr.bf16.mxu0 0
    %425 = vmatpush1.bf16.xpose.msra.mxu0 0
    %426 = vmatprep.subr.bf16.mxu0 0
    %427 = vmatpush1.bf16.xpose.msra.mxu0 0
    %428 = vmatprep.subr.bf16.mxu0 0
    %429 = vmatpush1.bf16.xpose.msra.mxu0 0
    %430 = vmatprep.subr.bf16.mxu0 0
    %431 = vmatpush1.bf16.xpose.msra.mxu0 0
    %432 = vmatprep.subr.bf16.mxu0 0
    %433 = vmatpush1.bf16.xpose.msra.mxu0 0
    %434 = vmatprep.mubr.bf16.mxu0 0
    %435 = vmatmul.mubr.bf16.gmra.mrb[0].mxu0 %v397
    %v436 = vpop.f32.mrb[0].mxu0
    %v437 = vadd.f32 0.0, %v436
    %v438 = vpop.f32.mrb[0].mxu0
    %v439 = vpop.f32.mrb[0].mxu0
    %v440 = vpop.f32.mrb[0].mxu0
    %441 = vdwg.mxu0
    %v442 = vmul.f32 %v437, 0.35355338
    %443 = vst.msk [vmem:[#allocation2 + $0x28] sm:$0xff] %vm136, %v442
    %444 = vrot.lane.b32.xlu0 %v341, 112
    %v445 = vpop.permute.xlu0 %444
    %446 = vrot.lane.b32.xlu0 %v341, 80
    %v447 = vpop.permute.xlu0 %446
    %v449 = vsel %vm136, %v445, 0
    %v452 = vsel %vm136, %v447, 0
    %454 = vmatprep.subr.bf16.mxu0 0
    %455 = vmatpush1.bf16.xpose.msra.mxu0 %v452
    %456 = vmatprep.subr.bf16.mxu0 0
    %457 = vmatpush1.bf16.xpose.msra.mxu0 0
    %458 = vmatprep.subr.bf16.mxu0 0
    %459 = vmatpush1.bf16.xpose.msra.mxu0 0
    %460 = vmatprep.subr.bf16.mxu0 0
    %461 = vmatpush1.bf16.xpose.msra.mxu0 0
    %462 = vmatprep.subr.bf16.mxu0 0
    %463 = vmatpush1.bf16.xpose.msra.mxu0 0
    %464 = vmatprep.subr.bf16.mxu0 0
    %465 = vmatpush1.bf16.xpose.msra.mxu0 0
    %466 = vmatprep.subr.bf16.mxu0 0
    %467 = vmatpush1.bf16.xpose.msra.mxu0 0
    %468 = vmatprep.subr.bf16.mxu0 0
    %469 = vmatpush1.bf16.xpose.msra.mxu0 0
    %470 = vmatprep.subr.bf16.mxu0 0
    %471 = vmatpush1.bf16.xpose.msra.mxu0 0
    %472 = vmatprep.subr.bf16.mxu0 0
    %473 = vmatpush1.bf16.xpose.msra.mxu0 0
    %474 = vmatprep.subr.bf16.mxu0 0
    %475 = vmatpush1.bf16.xpose.msra.mxu0 0
    %476 = vmatprep.subr.bf16.mxu0 0
    %477 = vmatpush1.bf16.xpose.msra.mxu0 0
    %478 = vmatprep.subr.bf16.mxu0 0
    %479 = vmatpush1.bf16.xpose.msra.mxu0 0
    %480 = vmatprep.subr.bf16.mxu0 0
    %481 = vmatpush1.bf16.xpose.msra.mxu0 0
    %482 = vmatprep.subr.bf16.mxu0 0
    %483 = vmatpush1.bf16.xpose.msra.mxu0 0
    %484 = vmatprep.subr.bf16.mxu0 0
    %485 = vmatpush1.bf16.xpose.msra.mxu0 0
    %486 = vmatprep.mubr.bf16.mxu0 0
    %487 = vmatmul.mubr.bf16.gmra.mrb[0].mxu0 %v449
    %v488 = vpop.f32.mrb[0].mxu0
    %v489 = vadd.f32 0.0, %v488
    %v490 = vpop.f32.mrb[0].mxu0
    %v491 = vpop.f32.mrb[0].mxu0
    %v492 = vpop.f32.mrb[0].mxu0
    %493 = vdwg.mxu0
    %v494 = vmul.f32 %v489, 0.35355338
    %495 = vst.msk [vmem:[#allocation2 + $0x30] sm:$0xff] %vm136, %v494
    %496 = vrot.lane.b32.xlu0 %v341, 104
    %v497 = vpop.permute.xlu0 %496
    %498 = vrot.lane.b32.xlu0 %v341, 72
    %v499 = vpop.permute.xlu0 %498
    %v501 = vsel %vm136, %v497, 0
    %v504 = vsel %vm136, %v499, 0
    %506 = vmatprep.subr.bf16.mxu0 0
    %507 = vmatpush1.bf16.xpose.msra.mxu0 %v504
    %508 = vmatprep.subr.bf16.mxu0 0
    %509 = vmatpush1.bf16.xpose.msra.mxu0 0
    %510 = vmatprep.subr.bf16.mxu0 0
    %511 = vmatpush1.bf16.xpose.msra.mxu0 0
    %512 = vmatprep.subr.bf16.mxu0 0
    %513 = vmatpush1.bf16.xpose.msra.mxu0 0
    %514 = vmatprep.subr.bf16.mxu0 0
    %515 = vmatpush1.bf16.xpose.msra.mxu0 0
    %516 = vmatprep.subr.bf16.mxu0 0
    %517 = vmatpush1.bf16.xpose.msra.mxu0 0
    %518 = vmatprep.subr.bf16.mxu0 0
    %519 = vmatpush1.bf16.xpose.msra.mxu0 0
    %520 = vmatprep.subr.bf16.mxu0 0
    %521 = vmatpush1.bf16.xpose.msra.mxu0 0
    %522 = vmatprep.subr.bf16.mxu0 0
    %523 = vmatpush1.bf16.xpose.msra.mxu0 0
    %524 = vmatprep.subr.bf16.mxu0 0
    %525 = vmatpush1.bf16.xpose.msra.mxu0 0
    %526 = vmatprep.subr.bf16.mxu0 0
    %527 = vmatpush1.bf16.xpose.msra.mxu0 0
    %528 = vmatprep.subr.bf16.mxu0 0
    %529 = vmatpush1.bf16.xpose.msra.mxu0 0
    %530 = vmatprep.subr.bf16.mxu0 0
    %531 = vmatpush1.bf16.xpose.msra.mxu0 0
    %532 = vmatprep.subr.bf16.mxu0 0
    %533 = vmatpush1.bf16.xpose.msra.mxu0 0
    %534 = vmatprep.subr.bf16.mxu0 0
    %535 = vmatpush1.bf16.xpose.msra.mxu0 0
    %536 = vmatprep.subr.bf16.mxu0 0
    %537 = vmatpush1.bf16.xpose.msra.mxu0 0
    %538 = vmatprep.mubr.bf16.mxu0 0
    %539 = vmatmul.mubr.bf16.gmra.mrb[0].mxu0 %v501
    %v540 = vpop.f32.mrb[0].mxu0
    %v541 = vadd.f32 0.0, %v540
    %v542 = vpop.f32.mrb[0].mxu0
    %v543 = vpop.f32.mrb[0].mxu0
    %v544 = vpop.f32.mrb[0].mxu0
    %545 = vdwg.mxu0
    %v546 = vmul.f32 %v541, 0.35355338
    %547 = vst.msk [vmem:[#allocation2 + $0x38] sm:$0xff] %vm136, %v546
    %v548 = vld [vmem:[#allocation2] sm:$0xff]
    %v549 = vld [vmem:[#allocation2 + $0x8] sm:$0xff]
    %v550 = vld [vmem:[#allocation2 + $0x10] sm:$0xff]
    %v551 = vld [vmem:[#allocation2 + $0x18] sm:$0xff]
    %v552 = vld [vmem:[#allocation2 + $0x20] sm:$0xff]
    %v553 = vld [vmem:[#allocation2 + $0x28] sm:$0xff]
    %v554 = vld [vmem:[#allocation2 + $0x30] sm:$0xff]
    %v555 = vld [vmem:[#allocation2 + $0x38] sm:$0xff]
    %v556 = vsel %vm136, %v548, -inf
    %557 = vmax.xlane.f32.xlu0 %v556
    %v558 = vpop.xlane.xlu0 %557
    %v559 = vsel %vm136, %v549, -inf
    %560 = vmax.xlane.f32.xlu0 %v559
    %v561 = vpop.xlane.xlu0 %560
    %v562 = vsel %vm136, %v550, -inf
    %563 = vmax.xlane.f32.xlu0 %v562
    %v564 = vpop.xlane.xlu0 %563
    %v565 = vsel %vm136, %v551, -inf
    %566 = vmax.xlane.f32.xlu0 %v565
    %v567 = vpop.xlane.xlu0 %566
    %v568 = vsel %vm136, %v552, -inf
    %569 = vmax.xlane.f32.xlu0 %v568
    %v570 = vpop.xlane.xlu0 %569
    %v571 = vsel %vm136, %v553, -inf
    %572 = vmax.xlane.f32.xlu0 %v571
    %v573 = vpop.xlane.xlu0 %572
    %v574 = vsel %vm136, %v554, -inf
    %575 = vmax.xlane.f32.xlu0 %v574
    %v576 = vpop.xlane.xlu0 %575
    %v577 = vsel %vm136, %v555, -inf
    %578 = vmax.xlane.f32.xlu0 %v577
    %v579 = vpop.xlane.xlu0 %578
    %v580 = vsub.f32 %v548, %v558
    %v581 = vsub.f32 %v549, %v561
    %v582 = vsub.f32 %v550, %v564
    %v583 = vsub.f32 %v551, %v567
    %v584 = vsub.f32 %v552, %v570
    %v585 = vsub.f32 %v553, %v573
    %v586 = vsub.f32 %v554, %v576
    %v587 = vsub.f32 %v555, %v579
    %v588 = vmul.f32 %v580, 1.442695
    %v589 = vpow.pop %v588
    %v590 = vmul.f32 %v581, 1.442695
    %v591 = vpow.pop %v590
    %v592 = vmul.f32 %v582, 1.442695
    %v593 = vpow.pop %v592
    %v594 = vmul.f32 %v583, 1.442695
    %v595 = vpow.pop %v594
    %v596 = vmul.f32 %v584, 1.442695
    %v597 = vpow.pop %v596
    %v598 = vmul.f32 %v585, 1.442695
    %v599 = vpow.pop %v598
    %v600 = vmul.f32 %v586, 1.442695
    %v601 = vpow.pop %v600
    %v602 = vmul.f32 %v587, 1.442695
    %v603 = vpow.pop %v602
    %v604 = vsel %vm136, %v589, 0.0
    %605 = vadd.xlane.f32.xlu0 %v604
    %v606 = vpop.xlane.xlu0 %605
    %v607 = vsel %vm136, %v591, 0.0
    %608 = vadd.xlane.f32.xlu0 %v607
    %v609 = vpop.xlane.xlu0 %608
    %v610 = vsel %vm136, %v593, 0.0
    %611 = vadd.xlane.f32.xlu0 %v610
    %v612 = vpop.xlane.xlu0 %611
    %v613 = vsel %vm136, %v595, 0.0
    %614 = vadd.xlane.f32.xlu0 %v613
    %v615 = vpop.xlane.xlu0 %614
    %v616 = vsel %vm136, %v597, 0.0
    %617 = vadd.xlane.f32.xlu0 %v616
    %v618 = vpop.xlane.xlu0 %617
    %v619 = vsel %vm136, %v599, 0.0
    %620 = vadd.xlane.f32.xlu0 %v619
    %v621 = vpop.xlane.xlu0 %620
    %v622 = vsel %vm136, %v601, 0.0
    %623 = vadd.xlane.f32.xlu0 %v622
    %v624 = vpop.xlane.xlu0 %623
    %v625 = vsel %vm136, %v603, 0.0
    %626 = vadd.xlane.f32.xlu0 %v625
    %v627 = vpop.xlane.xlu0 %626
    %v628 = vrcp.pop %v606
    %v629 = vrcp.pop %v609
    %v630 = vrcp.pop %v612
    %v631 = vrcp.pop %v615
    %v632 = vrcp.pop %v618
    %v633 = vrcp.pop %v621
    %v634 = vrcp.pop %v624
    %v635 = vrcp.pop %v627
    %v636 = vmul.f32 %v589, %v628
    %v637 = vmul.f32 %v591, %v629
    %v638 = vmul.f32 %v593, %v630
    %v639 = vmul.f32 %v595, %v631
    %v640 = vmul.f32 %v597, %v632
    %v641 = vmul.f32 %v599, %v633
    %v642 = vmul.f32 %v601, %v634
    %v643 = vmul.f32 %v603, %v635
    %v644 = vpack.c.bf16 %v637, %v636
    %v645 = vpack.c.bf16 %v639, %v638
    %v646 = vpack.c.bf16 %v641, %v640
    %v647 = vpack.c.bf16 %v643, %v642
    %648 = vrot.lane.b32.xlu0 %v132, 64
    %v649 = vpop.permute.xlu0 %648
    %v651 = vsel %vm136, %v644, 0
    %vm653 = vcmask 1043456
    %v655 = vsel %vm653, %v649, 0
    %657 = vmatprep.subr.bf16.mxu0 0
    %658 = vmatpush1.bf16.msra.mxu0 %v655
    %659 = vmatprep.subr.bf16.mxu0 0
    %660 = vmatpush1.bf16.msra.mxu0 0
    %661 = vmatprep.subr.bf16.mxu0 0
    %662 = vmatpush1.bf16.msra.mxu0 0
    %663 = vmatprep.subr.bf16.mxu0 0
    %664 = vmatpush1.bf16.msra.mxu0 0
    %665 = vmatprep.subr.bf16.mxu0 0
    %666 = vmatpush1.bf16.msra.mxu0 0
    %667 = vmatprep.subr.bf16.mxu0 0
    %668 = vmatpush1.bf16.msra.mxu0 0
    %669 = vmatprep.subr.bf16.mxu0 0
    %670 = vmatpush1.bf16.msra.mxu0 0
    %671 = vmatprep.subr.bf16.mxu0 0
    %672 = vmatpush1.bf16.msra.mxu0 0
    %673 = vmatprep.subr.bf16.mxu0 0
    %674 = vmatpush1.bf16.msra.mxu0 0
    %675 = vmatprep.subr.bf16.mxu0 0
    %676 = vmatpush1.bf16.msra.mxu0 0
    %677 = vmatprep.subr.bf16.mxu0 0
    %678 = vmatpush1.bf16.msra.mxu0 0
    %679 = vmatprep.subr.bf16.mxu0 0
    %680 = vmatpush1.bf16.msra.mxu0 0
    %681 = vmatprep.subr.bf16.mxu0 0
    %682 = vmatpush1.bf16.msra.mxu0 0
    %683 = vmatprep.subr.bf16.mxu0 0
    %684 = vmatpush1.bf16.msra.mxu0 0
    %685 = vmatprep.subr.bf16.mxu0 0
    %686 = vmatpush1.bf16.msra.mxu0 0
    %687 = vmatprep.subr.bf16.mxu0 0
    %688 = vmatpush1.bf16.msra.mxu0 0
    %689 = vmatprep.mubr.bf16.mxu0 0
    %690 = vmatmul.mubr.bf16.gmra.mrb[0].mxu0 %v651
    %v691 = vpop.f32.mrb[0].mxu0
    %v692 = vadd.f32 0.0, %v691
    %v693 = vpop.f32.mrb[0].mxu0
    %v694 = vpop.f32.mrb[0].mxu0
    %v695 = vpop.f32.mrb[0].mxu0
    %696 = vdwg.mxu0
    %v697 = vpack.c.bf16 %v692, %v692
    %v699 = vrot.slane %v644, 4
    %700 = vrot.lane.b32.xlu0 %v132, 56
    %v701 = vpop.permute.xlu0 %700
    %v703 = vsel %vm136, %v699, 0
    %v706 = vsel %vm653, %v701, 0
    %708 = vmatprep.subr.bf16.mxu0 0
    %709 = vmatpush1.bf16.msra.mxu0 %v706
    %710 = vmatprep.subr.bf16.mxu0 0
    %711 = vmatpush1.bf16.msra.mxu0 0
    %712 = vmatprep.subr.bf16.mxu0 0
    %713 = vmatpush1.bf16.msra.mxu0 0
    %714 = vmatprep.subr.bf16.mxu0 0
    %715 = vmatpush1.bf16.msra.mxu0 0
    %716 = vmatprep.subr.bf16.mxu0 0
    %717 = vmatpush1.bf16.msra.mxu0 0
    %718 = vmatprep.subr.bf16.mxu0 0
    %719 = vmatpush1.bf16.msra.mxu0 0
    %720 = vmatprep.subr.bf16.mxu0 0
    %721 = vmatpush1.bf16.msra.mxu0 0
    %722 = vmatprep.subr.bf16.mxu0 0
    %723 = vmatpush1.bf16.msra.mxu0 0
    %724 = vmatprep.subr.bf16.mxu0 0
    %725 = vmatpush1.bf16.msra.mxu0 0
    %726 = vmatprep.subr.bf16.mxu0 0
    %727 = vmatpush1.bf16.msra.mxu0 0
    %728 = vmatprep.subr.bf16.mxu0 0
    %729 = vmatpush1.bf16.msra.mxu0 0
    %730 = vmatprep.subr.bf16.mxu0 0
    %731 = vmatpush1.bf16.msra.mxu0 0
    %732 = vmatprep.subr.bf16.mxu0 0
    %733 = vmatpush1.bf16.msra.mxu0 0
    %734 = vmatprep.subr.bf16.mxu0 0
    %735 = vmatpush1.bf16.msra.mxu0 0
    %736 = vmatprep.subr.bf16.mxu0 0
    %737 = vmatpush1.bf16.msra.mxu0 0
    %738 = vmatprep.subr.bf16.mxu0 0
    %739 = vmatpush1.bf16.msra.mxu0 0
    %740 = vmatprep.mubr.bf16.mxu0 0
    %741 = vmatmul.mubr.bf16.gmra.mrb[0].mxu0 %v703
    %v742 = vpop.f32.mrb[0].mxu0
    %v743 = vadd.f32 0.0, %v742
    %v744 = vpop.f32.mrb[0].mxu0
    %v745 = vpop.f32.mrb[0].mxu0
    %v746 = vpop.f32.mrb[0].mxu0
    %747 = vdwg.mxu0
    %v748 = vpack.c.bf16 %v743, %v743
    %v749 = vpack.c.b16 %v76, %v76
    %750 = vrot.lane.b32.xlu0 %v749, 32
    %v751 = vpop.permute.xlu0 %750
    %v753 = vsel %vm136, %v748, 0
    %v756 = vsel %vm653, %v751, 0
    %758 = vmatprep.subr.bf16.mxu0 0
    %759 = vmatpush1.bf16.msra.mxu0 %v756
    %760 = vmatprep.subr.bf16.mxu0 0
    %761 = vmatpush1.bf16.msra.mxu0 0
    %762 = vmatprep.subr.bf16.mxu0 0
    %763 = vmatpush1.bf16.msra.mxu0 0
    %764 = vmatprep.subr.bf16.mxu0 0
    %765 = vmatpush1.bf16.msra.mxu0 0
    %766 = vmatprep.subr.bf16.mxu0 0
    %767 = vmatpush1.bf16.msra.mxu0 0
    %768 = vmatprep.subr.bf16.mxu0 0
    %769 = vmatpush1.bf16.msra.mxu0 0
    %770 = vmatprep.subr.bf16.mxu0 0
    %771 = vmatpush1.bf16.msra.mxu0 0
    %772 = vmatprep.subr.bf16.mxu0 0
    %773 = vmatpush1.bf16.msra.mxu0 0
    %774 = vmatprep.subr.bf16.mxu0 0
    %775 = vmatpush1.bf16.msra.mxu0 0
    %776 = vmatprep.subr.bf16.mxu0 0
    %777 = vmatpush1.bf16.msra.mxu0 0
    %778 = vmatprep.subr.bf16.mxu0 0
    %779 = vmatpush1.bf16.msra.mxu0 0
    %780 = vmatprep.subr.bf16.mxu0 0
    %781 = vmatpush1.bf16.msra.mxu0 0
    %782 = vmatprep.subr.bf16.mxu0 0
    %783 = vmatpush1.bf16.msra.mxu0 0
    %784 = vmatprep.subr.bf16.mxu0 0
    %785 = vmatpush1.bf16.msra.mxu0 0
    %786 = vmatprep.subr.bf16.mxu0 0
    %787 = vmatpush1.bf16.msra.mxu0 0
    %788 = vmatprep.subr.bf16.mxu0 0
    %789 = vmatpush1.bf16.msra.mxu0 0
    %790 = vmatprep.mubr.bf16.mxu0 0
    %791 = vmatmul.mubr.bf16.gmra.mrb[0].mxu0 %v753
    %v792 = vpop.f32.mrb[0].mxu0
    %v793 = vadd.f32 0.0, %v792
    %v794 = vpop.f32.mrb[0].mxu0
    %v795 = vpop.f32.mrb[0].mxu0
    %v796 = vpop.f32.mrb[0].mxu0
    %797 = vdwg.mxu0
    %v798 = vpack.c.b16 %v75, %v75
    %799 = vrot.lane.b32.xlu0 %v798, 32
    %v800 = vpop.permute.xlu0 %799
    %v802 = vsel %vm136, %v697, 0
    %v805 = vsel %vm653, %v800, 0
    %807 = vmatprep.subr.bf16.mxu0 0
    %808 = vmatpush1.bf16.msra.mxu0 %v805
    %809 = vmatprep.subr.bf16.mxu0 0
    %810 = vmatpush1.bf16.msra.mxu0 0
    %811 = vmatprep.subr.bf16.mxu0 0
    %812 = vmatpush1.bf16.msra.mxu0 0
    %813 = vmatprep.subr.bf16.mxu0 0
    %814 = vmatpush1.bf16.msra.mxu0 0
    %815 = vmatprep.subr.bf16.mxu0 0
    %816 = vmatpush1.bf16.msra.mxu0 0
    %817 = vmatprep.subr.bf16.mxu0 0
    %818 = vmatpush1.bf16.msra.mxu0 0
    %819 = vmatprep.subr.bf16.mxu0 0
    %820 = vmatpush1.bf16.msra.mxu0 0
    %821 = vmatprep.subr.bf16.mxu0 0
    %822 = vmatpush1.bf16.msra.mxu0 0
    %823 = vmatprep.subr.bf16.mxu0 0
    %824 = vmatpush1.bf16.msra.mxu0 0
    %825 = vmatprep.subr.bf16.mxu0 0
    %826 = vmatpush1.bf16.msra.mxu0 0
    %827 = vmatprep.subr.bf16.mxu0 0
    %828 = vmatpush1.bf16.msra.mxu0 0
    %829 = vmatprep.subr.bf16.mxu0 0
    %830 = vmatpush1.bf16.msra.mxu0 0
    %831 = vmatprep.subr.bf16.mxu0 0
    %832 = vmatpush1.bf16.msra.mxu0 0
    %833 = vmatprep.subr.bf16.mxu0 0
    %834 = vmatpush1.bf16.msra.mxu0 0
    %835 = vmatprep.subr.bf16.mxu0 0
    %836 = vmatpush1.bf16.msra.mxu0 0
    %837 = vmatprep.subr.bf16.mxu0 0
    %838 = vmatpush1.bf16.msra.mxu0 0
    %839 = vmatprep.mubr.bf16.mxu0 0
    %840 = vmatmul.mubr.bf16.gmra.mrb[0].mxu0 %v802
    %v841 = vpop.f32.mrb[0].mxu0
    %v842 = vadd.f32 %v793, %v841
    %v843 = vpop.f32.mrb[0].mxu0
    %v844 = vpop.f32.mrb[0].mxu0
    %v845 = vpop.f32.mrb[0].mxu0
    %846 = vdwg.mxu0
    %847 = vrot.lane.b32.xlu0 %v132, 48
    %v848 = vpop.permute.xlu0 %847
    %v850 = vsel %vm136, %v645, 0
    %v853 = vsel %vm653, %v848, 0
    %855 = vmatprep.subr.bf16.mxu0 0
    %856 = vmatpush1.bf16.msra.mxu0 %v853
    %857 = vmatprep.subr.bf16.mxu0 0
    %858 = vmatpush1.bf16.msra.mxu0 0
    %859 = vmatprep.subr.bf16.mxu0 0
    %860 = vmatpush1.bf16.msra.mxu0 0
    %861 = vmatprep.subr.bf16.mxu0 0
    %862 = vmatpush1.bf16.msra.mxu0 0
    %863 = vmatprep.subr.bf16.mxu0 0
    %864 = vmatpush1.bf16.msra.mxu0 0
    %865 = vmatprep.subr.bf16.mxu0 0
    %866 = vmatpush1.bf16.msra.mxu0 0
    %867 = vmatprep.subr.bf16.mxu0 0
    %868 = vmatpush1.bf16.msra.mxu0 0
    %869 = vmatprep.subr.bf16.mxu0 0
    %870 = vmatpush1.bf16.msra.mxu0 0
    %871 = vmatprep.subr.bf16.mxu0 0
    %872 = vmatpush1.bf16.msra.mxu0 0
    %873 = vmatprep.subr.bf16.mxu0 0
    %874 = vmatpush1.bf16.msra.mxu0 0
    %875 = vmatprep.subr.bf16.mxu0 0
    %876 = vmatpush1.bf16.msra.mxu0 0
    %877 = vmatprep.subr.bf16.mxu0 0
    %878 = vmatpush1.bf16.msra.mxu0 0
    %879 = vmatprep.subr.bf16.mxu0 0
    %880 = vmatpush1.bf16.msra.mxu0 0
    %881 = vmatprep.subr.bf16.mxu0 0
    %882 = vmatpush1.bf16.msra.mxu0 0
    %883 = vmatprep.subr.bf16.mxu0 0
    %884 = vmatpush1.bf16.msra.mxu0 0
    %885 = vmatprep.subr.bf16.mxu0 0
    %886 = vmatpush1.bf16.msra.mxu0 0
    %887 = vmatprep.mubr.bf16.mxu0 0
    %888 = vmatmul.mubr.bf16.gmra.mrb[0].mxu0 %v850
    %v889 = vpop.f32.mrb[0].mxu0
    %v890 = vadd.f32 0.0, %v889
    %v891 = vpop.f32.mrb[0].mxu0
    %v892 = vpop.f32.mrb[0].mxu0
    %v893 = vpop.f32.mrb[0].mxu0
    %894 = vdwg.mxu0
    %v895 = vpack.c.bf16 %v890, %v890
    %v896 = vpack.c.b16 %v77, %v77
    %897 = vrot.lane.b32.xlu0 %v896, 32
    %v898 = vpop.permute.xlu0 %897
    %v900 = vsel %vm136, %v895, 0
    %v903 = vsel %vm653, %v898, 0
    %905 = vmatprep.subr.bf16.mxu0 0
    %906 = vmatpush1.bf16.msra.mxu0 %v903
    %907 = vmatprep.subr.bf16.mxu0 0
    %908 = vmatpush1.bf16.msra.mxu0 0
    %909 = vmatprep.subr.bf16.mxu0 0
    %910 = vmatpush1.bf16.msra.mxu0 0
    %911 = vmatprep.subr.bf16.mxu0 0
    %912 = vmatpush1.bf16.msra.mxu0 0
    %913 = vmatprep.subr.bf16.mxu0 0
    %914 = vmatpush1.bf16.msra.mxu0 0
    %915 = vmatprep.subr.bf16.mxu0 0
    %916 = vmatpush1.bf16.msra.mxu0 0
    %917 = vmatprep.subr.bf16.mxu0 0
    %918 = vmatpush1.bf16.msra.mxu0 0
    %919 = vmatprep.subr.bf16.mxu0 0
    %920 = vmatpush1.bf16.msra.mxu0 0
    %921 = vmatprep.subr.bf16.mxu0 0
    %922 = vmatpush1.bf16.msra.mxu0 0
    %923 = vmatprep.subr.bf16.mxu0 0
    %924 = vmatpush1.bf16.msra.mxu0 0
    %925 = vmatprep.subr.bf16.mxu0 0
    %926 = vmatpush1.bf16.msra.mxu0 0
    %927 = vmatprep.subr.bf16.mxu0 0
    %928 = vmatpush1.bf16.msra.mxu0 0
    %929 = vmatprep.subr.bf16.mxu0 0
    %930 = vmatpush1.bf16.msra.mxu0 0
    %931 = vmatprep.subr.bf16.mxu0 0
    %932 = vmatpush1.bf16.msra.mxu0 0
    %933 = vmatprep.subr.bf16.mxu0 0
    %934 = vmatpush1.bf16.msra.mxu0 0
    %935 = vmatprep.subr.bf16.mxu0 0
    %936 = vmatpush1.bf16.msra.mxu0 0
    %937 = vmatprep.mubr.bf16.mxu0 0
    %938 = vmatmul.mubr.bf16.gmra.mrb[0].mxu0 %v900
    %v939 = vpop.f32.mrb[0].mxu0
    %v940 = vadd.f32 0.0, %v939
    %v941 = vpop.f32.mrb[0].mxu0
    %v942 = vpop.f32.mrb[0].mxu0
    %v943 = vpop.f32.mrb[0].mxu0
    %944 = vdwg.mxu0
    %v945 = vadd.f32 %v842, %v940
    %v947 = vrot.slane %v645, 4
    %948 = vrot.lane.b32.xlu0 %v132, 40
    %v949 = vpop.permute.xlu0 %948
    %v951 = vsel %vm136, %v947, 0
    %v954 = vsel %vm653, %v949, 0
    %956 = vmatprep.subr.bf16.mxu0 0
    %957 = vmatpush1.bf16.msra.mxu0 %v954
    %958 = vmatprep.subr.bf16.mxu0 0
    %959 = vmatpush1.bf16.msra.mxu0 0
    %960 = vmatprep.subr.bf16.mxu0 0
    %961 = vmatpush1.bf16.msra.mxu0 0
    %962 = vmatprep.subr.bf16.mxu0 0
    %963 = vmatpush1.bf16.msra.mxu0 0
    %964 = vmatprep.subr.bf16.mxu0 0
    %965 = vmatpush1.bf16.msra.mxu0 0
    %966 = vmatprep.subr.bf16.mxu0 0
    %967 = vmatpush1.bf16.msra.mxu0 0
    %968 = vmatprep.subr.bf16.mxu0 0
    %969 = vmatpush1.bf16.msra.mxu0 0
    %970 = vmatprep.subr.bf16.mxu0 0
    %971 = vmatpush1.bf16.msra.mxu0 0
    %972 = vmatprep.subr.bf16.mxu0 0
    %973 = vmatpush1.bf16.msra.mxu0 0
    %974 = vmatprep.subr.bf16.mxu0 0
    %975 = vmatpush1.bf16.msra.mxu0 0
    %976 = vmatprep.subr.bf16.mxu0 0
    %977 = vmatpush1.bf16.msra.mxu0 0
    %978 = vmatprep.subr.bf16.mxu0 0
    %979 = vmatpush1.bf16.msra.mxu0 0
    %980 = vmatprep.subr.bf16.mxu0 0
    %981 = vmatpush1.bf16.msra.mxu0 0
    %982 = vmatprep.subr.bf16.mxu0 0
    %983 = vmatpush1.bf16.msra.mxu0 0
    %984 = vmatprep.subr.bf16.mxu0 0
    %985 = vmatpush1.bf16.msra.mxu0 0
    %986 = vmatprep.subr.bf16.mxu0 0
    %987 = vmatpush1.bf16.msra.mxu0 0
    %988 = vmatprep.mubr.bf16.mxu0 0
    %989 = vmatmul.mubr.bf16.gmra.mrb[0].mxu0 %v951
    %v990 = vpop.f32.mrb[0].mxu0
    %v991 = vadd.f32 0.0, %v990
    %v992 = vpop.f32.mrb[0].mxu0
    %v993 = vpop.f32.mrb[0].mxu0
    %v994 = vpop.f32.mrb[0].mxu0
    %995 = vdwg.mxu0
    %v996 = vpack.c.bf16 %v991, %v991
    %v997 = vpack.c.b16 %v78, %v78
    %998 = vrot.lane.b32.xlu0 %v997, 32
    %v999 = vpop.permute.xlu0 %998
    %v1001 = vsel %vm136, %v996, 0
    %v1004 = vsel %vm653, %v999, 0
    %1006 = vmatprep.subr.bf16.mxu0 0
    %1007 = vmatpush1.bf16.msra.mxu0 %v1004
    %1008 = vmatprep.subr.bf16.mxu0 0
    %1009 = vmatpush1.bf16.msra.mxu0 0
    %1010 = vmatprep.subr.bf16.mxu0 0
    %1011 = vmatpush1.bf16.msra.mxu0 0
    %1012 = vmatprep.subr.bf16.mxu0 0
    %1013 = vmatpush1.bf16.msra.mxu0 0
    %1014 = vmatprep.subr.bf16.mxu0 0
    %1015 = vmatpush1.bf16.msra.mxu0 0
    %1016 = vmatprep.subr.bf16.mxu0 0
    %1017 = vmatpush1.bf16.msra.mxu0 0
    %1018 = vmatprep.subr.bf16.mxu0 0
    %1019 = vmatpush1.bf16.msra.mxu0 0
    %1020 = vmatprep.subr.bf16.mxu0 0
    %1021 = vmatpush1.bf16.msra.mxu0 0
    %1022 = vmatprep.subr.bf16.mxu0 0
    %1023 = vmatpush1.bf16.msra.mxu0 0
    %1024 = vmatprep.subr.bf16.mxu0 0
    %1025 = vmatpush1.bf16.msra.mxu0 0
    %1026 = vmatprep.subr.bf16.mxu0 0
    %1027 = vmatpush1.bf16.msra.mxu0 0
    %1028 = vmatprep.subr.bf16.mxu0 0
    %1029 = vmatpush1.bf16.msra.mxu0 0
    %1030 = vmatprep.subr.bf16.mxu0 0
    %1031 = vmatpush1.bf16.msra.mxu0 0
    %1032 = vmatprep.subr.bf16.mxu0 0
    %1033 = vmatpush1.bf16.msra.mxu0 0
    %1034 = vmatprep.subr.bf16.mxu0 0
    %1035 = vmatpush1.bf16.msra.mxu0 0
    %1036 = vmatprep.subr.bf16.mxu0 0
    %1037 = vmatpush1.bf16.msra.mxu0 0
    %1038 = vmatprep.mubr.bf16.mxu0 0
    %1039 = vmatmul.mubr.bf16.gmra.mrb[0].mxu0 %v1001
    %v1040 = vpop.f32.mrb[0].mxu0
    %v1041 = vadd.f32 0.0, %v1040
    %v1042 = vpop.f32.mrb[0].mxu0
    %v1043 = vpop.f32.mrb[0].mxu0
    %v1044 = vpop.f32.mrb[0].mxu0
    %1045 = vdwg.mxu0
    %v1046 = vadd.f32 %v945, %v1041
    %1047 = vst.msk [vmem:[#allocation3] sm:$0xff] %vm87, %v1046
    %1048 = vrot.lane.b32.xlu0 %v341, 64
    %v1049 = vpop.permute.xlu0 %1048
    %v1051 = vsel %vm136, %v646, 0
    %v1054 = vsel %vm653, %v1049, 0
    %1056 = vmatprep.subr.bf16.mxu0 0
    %1057 = vmatpush1.bf16.msra.mxu0 %v1054
    %1058 = vmatprep.subr.bf16.mxu0 0
    %1059 = vmatpush1.bf16.msra.mxu0 0
    %1060 = vmatprep.subr.bf16.mxu0 0
    %1061 = vmatpush1.bf16.msra.mxu0 0
    %1062 = vmatprep.subr.bf16.mxu0 0
    %1063 = vmatpush1.bf16.msra.mxu0 0
    %1064 = vmatprep.subr.bf16.mxu0 0
    %1065 = vmatpush1.bf16.msra.mxu0 0
    %1066 = vmatprep.subr.bf16.mxu0 0
    %1067 = vmatpush1.bf16.msra.mxu0 0
    %1068 = vmatprep.subr.bf16.mxu0 0
    %1069 = vmatpush1.bf16.msra.mxu0 0
    %1070 = vmatprep.subr.bf16.mxu0 0
    %1071 = vmatpush1.bf16.msra.mxu0 0
    %1072 = vmatprep.subr.bf16.mxu0 0
    %1073 = vmatpush1.bf16.msra.mxu0 0
    %1074 = vmatprep.subr.bf16.mxu0 0
    %1075 = vmatpush1.bf16.msra.mxu0 0
    %1076 = vmatprep.subr.bf16.mxu0 0
    %1077 = vmatpush1.bf16.msra.mxu0 0
    %1078 = vmatprep.subr.bf16.mxu0 0
    %1079 = vmatpush1.bf16.msra.mxu0 0
    %1080 = vmatprep.subr.bf16.mxu0 0
    %1081 = vmatpush1.bf16.msra.mxu0 0
    %1082 = vmatprep.subr.bf16.mxu0 0
    %1083 = vmatpush1.bf16.msra.mxu0 0
    %1084 = vmatprep.subr.bf16.mxu0 0
    %1085 = vmatpush1.bf16.msra.mxu0 0
    %1086 = vmatprep.subr.bf16.mxu0 0
    %1087 = vmatpush1.bf16.msra.mxu0 0
    %1088 = vmatprep.mubr.bf16.mxu0 0
    %1089 = vmatmul.mubr.bf16.gmra.mrb[0].mxu0 %v1051
    %v1090 = vpop.f32.mrb[0].mxu0
    %v1091 = vadd.f32 0.0, %v1090
    %v1092 = vpop.f32.mrb[0].mxu0
    %v1093 = vpop.f32.mrb[0].mxu0
    %v1094 = vpop.f32.mrb[0].mxu0
    %1095 = vdwg.mxu0
    %v1096 = vpack.c.bf16 %v1091, %v1091
    %v1098 = vrot.slane %v646, 4
    %1099 = vrot.lane.b32.xlu0 %v341, 56
    %v1100 = vpop.permute.xlu0 %1099
    %v1102 = vsel %vm136, %v1098, 0
    %v1105 = vsel %vm653, %v1100, 0
    %1107 = vmatprep.subr.bf16.mxu0 0
    %1108 = vmatpush1.bf16.msra.mxu0 %v1105
    %1109 = vmatprep.subr.bf16.mxu0 0
    %1110 = vmatpush1.bf16.msra.mxu0 0
    %1111 = vmatprep.subr.bf16.mxu0 0
    %1112 = vmatpush1.bf16.msra.mxu0 0
    %1113 = vmatprep.subr.bf16.mxu0 0
    %1114 = vmatpush1.bf16.msra.mxu0 0
    %1115 = vmatprep.subr.bf16.mxu0 0
    %1116 = vmatpush1.bf16.msra.mxu0 0
    %1117 = vmatprep.subr.bf16.mxu0 0
    %1118 = vmatpush1.bf16.msra.mxu0 0
    %1119 = vmatprep.subr.bf16.mxu0 0
    %1120 = vmatpush1.bf16.msra.mxu0 0
    %1121 = vmatprep.subr.bf16.mxu0 0
    %1122 = vmatpush1.bf16.msra.mxu0 0
    %1123 = vmatprep.subr.bf16.mxu0 0
    %1124 = vmatpush1.bf16.msra.mxu0 0
    %1125 = vmatprep.subr.bf16.mxu0 0
    %1126 = vmatpush1.bf16.msra.mxu0 0
    %1127 = vmatprep.subr.bf16.mxu0 0
    %1128 = vmatpush1.bf16.msra.mxu0 0
    %1129 = vmatprep.subr.bf16.mxu0 0
    %1130 = vmatpush1.bf16.msra.mxu0 0
    %1131 = vmatprep.subr.bf16.mxu0 0
    %1132 = vmatpush1.bf16.msra.mxu0 0
    %1133 = vmatprep.subr.bf16.mxu0 0
    %1134 = vmatpush1.bf16.msra.mxu0 0
    %1135 = vmatprep.subr.bf16.mxu0 0
    %1136 = vmatpush1.bf16.msra.mxu0 0
    %1137 = vmatprep.subr.bf16.mxu0 0
    %1138 = vmatpush1.bf16.msra.mxu0 0
    %1139 = vmatprep.mubr.bf16.mxu0 0
    %1140 = vmatmul.mubr.bf16.gmra.mrb[0].mxu0 %v1102
    %v1141 = vpop.f32.mrb[0].mxu0
    %v1142 = vadd.f32 0.0, %v1141
    %v1143 = vpop.f32.mrb[0].mxu0
    %v1144 = vpop.f32.mrb[0].mxu0
    %v1145 = vpop.f32.mrb[0].mxu0
    %1146 = vdwg.mxu0
    %v1147 = vpack.c.bf16 %v1142, %v1142
    %v1149 = vsel %vm136, %v1147, 0
    %1151 = vmatprep.subr.bf16.mxu0 0
    %1152 = vmatpush1.bf16.msra.mxu0 %v756
    %1153 = vmatprep.subr.bf16.mxu0 0
    %1154 = vmatpush1.bf16.msra.mxu0 0
    %1155 = vmatprep.subr.bf16.mxu0 0
    %1156 = vmatpush1.bf16.msra.mxu0 0
    %1157 = vmatprep.subr.bf16.mxu0 0
    %1158 = vmatpush1.bf16.msra.mxu0 0
    %1159 = vmatprep.subr.bf16.mxu0 0
    %1160 = vmatpush1.bf16.msra.mxu0 0
    %1161 = vmatprep.subr.bf16.mxu0 0
    %1162 = vmatpush1.bf16.msra.mxu0 0
    %1163 = vmatprep.subr.bf16.mxu0 0
    %1164 = vmatpush1.bf16.msra.mxu0 0
    %1165 = vmatprep.subr.bf16.mxu0 0
    %1166 = vmatpush1.bf16.msra.mxu0 0
    %1167 = vmatprep.subr.bf16.mxu0 0
    %1168 = vmatpush1.bf16.msra.mxu0 0
    %1169 = vmatprep.subr.bf16.mxu0 0
    %1170 = vmatpush1.bf16.msra.mxu0 0
    %1171 = vmatprep.subr.bf16.mxu0 0
    %1172 = vmatpush1.bf16.msra.mxu0 0
    %1173 = vmatprep.subr.bf16.mxu0 0
    %1174 = vmatpush1.bf16.msra.mxu0 0
    %1175 = vmatprep.subr.bf16.mxu0 0
    %1176 = vmatpush1.bf16.msra.mxu0 0
    %1177 = vmatprep.subr.bf16.mxu0 0
    %1178 = vmatpush1.bf16.msra.mxu0 0
    %1179 = vmatprep.subr.bf16.mxu0 0
    %1180 = vmatpush1.bf16.msra.mxu0 0
    %1181 = vmatprep.subr.bf16.mxu0 0
    %1182 = vmatpush1.bf16.msra.mxu0 0
    %1183 = vmatprep.mubr.bf16.mxu0 0
    %1184 = vmatmul.mubr.bf16.gmra.mrb[0].mxu0 %v1149
    %v1185 = vpop.f32.mrb[0].mxu0
    %v1186 = vadd.f32 0.0, %v1185
    %v1187 = vpop.f32.mrb[0].mxu0
    %v1188 = vpop.f32.mrb[0].mxu0
    %v1189 = vpop.f32.mrb[0].mxu0
    %1190 = vdwg.mxu0
    %v1192 = vsel %vm136, %v1096, 0
    %1194 = vmatprep.subr.bf16.mxu0 0
    %1195 = vmatpush1.bf16.msra.mxu0 %v805
    %1196 = vmatprep.subr.bf16.mxu0 0
    %1197 = vmatpush1.bf16.msra.mxu0 0
    %1198 = vmatprep.subr.bf16.mxu0 0
    %1199 = vmatpush1.bf16.msra.mxu0 0
    %1200 = vmatprep.subr.bf16.mxu0 0
    %1201 = vmatpush1.bf16.msra.mxu0 0
    %1202 = vmatprep.subr.bf16.mxu0 0
    %1203 = vmatpush1.bf16.msra.mxu0 0
    %1204 = vmatprep.subr.bf16.mxu0 0
    %1205 = vmatpush1.bf16.msra.mxu0 0
    %1206 = vmatprep.subr.bf16.mxu0 0
    %1207 = vmatpush1.bf16.msra.mxu0 0
    %1208 = vmatprep.subr.bf16.mxu0 0
    %1209 = vmatpush1.bf16.msra.mxu0 0
    %1210 = vmatprep.subr.bf16.mxu0 0
    %1211 = vmatpush1.bf16.msra.mxu0 0
    %1212 = vmatprep.subr.bf16.mxu0 0
    %1213 = vmatpush1.bf16.msra.mxu0 0
    %1214 = vmatprep.subr.bf16.mxu0 0
    %1215 = vmatpush1.bf16.msra.mxu0 0
    %1216 = vmatprep.subr.bf16.mxu0 0
    %1217 = vmatpush1.bf16.msra.mxu0 0
    %1218 = vmatprep.subr.bf16.mxu0 0
    %1219 = vmatpush1.bf16.msra.mxu0 0
    %1220 = vmatprep.subr.bf16.mxu0 0
    %1221 = vmatpush1.bf16.msra.mxu0 0
    %1222 = vmatprep.subr.bf16.mxu0 0
    %1223 = vmatpush1.bf16.msra.mxu0 0
    %1224 = vmatprep.subr.bf16.mxu0 0
    %1225 = vmatpush1.bf16.msra.mxu0 0
    %1226 = vmatprep.mubr.bf16.mxu0 0
    %1227 = vmatmul.mubr.bf16.gmra.mrb[0].mxu0 %v1192
    %v1228 = vpop.f32.mrb[0].mxu0
    %v1229 = vadd.f32 %v1186, %v1228
    %v1230 = vpop.f32.mrb[0].mxu0
    %v1231 = vpop.f32.mrb[0].mxu0
    %v1232 = vpop.f32.mrb[0].mxu0
    %1233 = vdwg.mxu0
    %1234 = vrot.lane.b32.xlu0 %v341, 48
    %v1235 = vpop.permute.xlu0 %1234
    %v1237 = vsel %vm136, %v647, 0
    %v1240 = vsel %vm653, %v1235, 0
    %1242 = vmatprep.subr.bf16.mxu0 0
    %1243 = vmatpush1.bf16.msra.mxu0 %v1240
    %1244 = vmatprep.subr.bf16.mxu0 0
    %1245 = vmatpush1.bf16.msra.mxu0 0
    %1246 = vmatprep.subr.bf16.mxu0 0
    %1247 = vmatpush1.bf16.msra.mxu0 0
    %1248 = vmatprep.subr.bf16.mxu0 0
    %1249 = vmatpush1.bf16.msra.mxu0 0
    %1250 = vmatprep.subr.bf16.mxu0 0
    %1251 = vmatpush1.bf16.msra.mxu0 0
    %1252 = vmatprep.subr.bf16.mxu0 0
    %1253 = vmatpush1.bf16.msra.mxu0 0
    %1254 = vmatprep.subr.bf16.mxu0 0
    %1255 = vmatpush1.bf16.msra.mxu0 0
    %1256 = vmatprep.subr.bf16.mxu0 0
    %1257 = vmatpush1.bf16.msra.mxu0 0
    %1258 = vmatprep.subr.bf16.mxu0 0
    %1259 = vmatpush1.bf16.msra.mxu0 0
    %1260 = vmatprep.subr.bf16.mxu0 0
    %1261 = vmatpush1.bf16.msra.mxu0 0
    %1262 = vmatprep.subr.bf16.mxu0 0
    %1263 = vmatpush1.bf16.msra.mxu0 0
    %1264 = vmatprep.subr.bf16.mxu0 0
    %1265 = vmatpush1.bf16.msra.mxu0 0
    %1266 = vmatprep.subr.bf16.mxu0 0
    %1267 = vmatpush1.bf16.msra.mxu0 0
    %1268 = vmatprep.subr.bf16.mxu0 0
    %1269 = vmatpush1.bf16.msra.mxu0 0
    %1270 = vmatprep.subr.bf16.mxu0 0
    %1271 = vmatpush1.bf16.msra.mxu0 0
    %1272 = vmatprep.subr.bf16.mxu0 0
    %1273 = vmatpush1.bf16.msra.mxu0 0
    %1274 = vmatprep.mubr.bf16.mxu0 0
    %1275 = vmatmul.mubr.bf16.gmra.mrb[0].mxu0 %v1237
    %v1276 = vpop.f32.mrb[0].mxu0
    %v1277 = vadd.f32 0.0, %v1276
    %v1278 = vpop.f32.mrb[0].mxu0
    %v1279 = vpop.f32.mrb[0].mxu0
    %v1280 = vpop.f32.mrb[0].mxu0
    %1281 = vdwg.mxu0
    %v1282 = vpack.c.bf16 %v1277, %v1277
    %v1284 = vsel %vm136, %v1282, 0
    %1286 = vmatprep.subr.bf16.mxu0 0
    %1287 = vmatpush1.bf16.msra.mxu0 %v903
    %1288 = vmatprep.subr.bf16.mxu0 0
    %1289 = vmatpush1.bf16.msra.mxu0 0
    %1290 = vmatprep.subr.bf16.mxu0 0
    %1291 = vmatpush1.bf16.msra.mxu0 0
    %1292 = vmatprep.subr.bf16.mxu0 0
    %1293 = vmatpush1.bf16.msra.mxu0 0
    %1294 = vmatprep.subr.bf16.mxu0 0
    %1295 = vmatpush1.bf16.msra.mxu0 0
    %1296 = vmatprep.subr.bf16.mxu0 0
    %1297 = vmatpush1.bf16.msra.mxu0 0
    %1298 = vmatprep.subr.bf16.mxu0 0
    %1299 = vmatpush1.bf16.msra.mxu0 0
    %1300 = vmatprep.subr.bf16.mxu0 0
    %1301 = vmatpush1.bf16.msra.mxu0 0
    %1302 = vmatprep.subr.bf16.mxu0 0
    %1303 = vmatpush1.bf16.msra.mxu0 0
    %1304 = vmatprep.subr.bf16.mxu0 0
    %1305 = vmatpush1.bf16.msra.mxu0 0
    %1306 = vmatprep.subr.bf16.mxu0 0
    %1307 = vmatpush1.bf16.msra.mxu0 0
    %1308 = vmatprep.subr.bf16.mxu0 0
    %1309 = vmatpush1.bf16.msra.mxu0 0
    %1310 = vmatprep.subr.bf16.mxu0 0
    %1311 = vmatpush1.bf16.msra.mxu0 0
    %1312 = vmatprep.subr.bf16.mxu0 0
    %1313 = vmatpush1.bf16.msra.mxu0 0
    %1314 = vmatprep.subr.bf16.mxu0 0
    %1315 = vmatpush1.bf16.msra.mxu0 0
    %1316 = vmatprep.subr.bf16.mxu0 0
    %1317 = vmatpush1.bf16.msra.mxu0 0
    %1318 = vmatprep.mubr.bf16.mxu0 0
    %1319 = vmatmul.mubr.bf16.gmra.mrb[0].mxu0 %v1284
    %v1320 = vpop.f32.mrb[0].mxu0
    %v1321 = vadd.f32 0.0, %v1320
    %v1322 = vpop.f32.mrb[0].mxu0
    %v1323 = vpop.f32.mrb[0].mxu0
    %v1324 = vpop.f32.mrb[0].mxu0
    %1325 = vdwg.mxu0
    %v1326 = vadd.f32 %v1229, %v1321
    %v1328 = vrot.slane %v647, 4
    %1329 = vrot.lane.b32.xlu0 %v341, 40
    %v1330 = vpop.permute.xlu0 %1329
    %v1332 = vsel %vm136, %v1328, 0
    %v1335 = vsel %vm653, %v1330, 0
    %1337 = vmatprep.subr.bf16.mxu0 0
    %1338 = vmatpush1.bf16.msra.mxu0 %v1335
    %1339 = vmatprep.subr.bf16.mxu0 0
    %1340 = vmatpush1.bf16.msra.mxu0 0
    %1341 = vmatprep.subr.bf16.mxu0 0
    %1342 = vmatpush1.bf16.msra.mxu0 0
    %1343 = vmatprep.subr.bf16.mxu0 0
    %1344 = vmatpush1.bf16.msra.mxu0 0
    %1345 = vmatprep.subr.bf16.mxu0 0
    %1346 = vmatpush1.bf16.msra.mxu0 0
    %1347 = vmatprep.subr.bf16.mxu0 0
    %1348 = vmatpush1.bf16.msra.mxu0 0
    %1349 = vmatprep.subr.bf16.mxu0 0
    %1350 = vmatpush1.bf16.msra.mxu0 0
    %1351 = vmatprep.subr.bf16.mxu0 0
    %1352 = vmatpush1.bf16.msra.mxu0 0
    %1353 = vmatprep.subr.bf16.mxu0 0
    %1354 = vmatpush1.bf16.msra.mxu0 0
    %1355 = vmatprep.subr.bf16.mxu0 0
    %1356 = vmatpush1.bf16.msra.mxu0 0
    %1357 = vmatprep.subr.bf16.mxu0 0
    %1358 = vmatpush1.bf16.msra.mxu0 0
    %1359 = vmatprep.subr.bf16.mxu0 0
    %1360 = vmatpush1.bf16.msra.mxu0 0
    %1361 = vmatprep.subr.bf16.mxu0 0
    %1362 = vmatpush1.bf16.msra.mxu0 0
    %1363 = vmatprep.subr.bf16.mxu0 0
    %1364 = vmatpush1.bf16.msra.mxu0 0
    %1365 = vmatprep.subr.bf16.mxu0 0
    %1366 = vmatpush1.bf16.msra.mxu0 0
    %1367 = vmatprep.subr.bf16.mxu0 0
    %1368 = vmatpush1.bf16.msra.mxu0 0
    %1369 = vmatprep.mubr.bf16.mxu0 0
    %1370 = vmatmul.mubr.bf16.gmra.mrb[0].mxu0 %v1332
    %v1371 = vpop.f32.mrb[0].mxu0
    %v1372 = vadd.f32 0.0, %v1371
    %v1373 = vpop.f32.mrb[0].mxu0
    %v1374 = vpop.f32.mrb[0].mxu0
    %v1375 = vpop.f32.mrb[0].mxu0
    %1376 = vdwg.mxu0
    %v1377 = vpack.c.bf16 %v1372, %v1372
    %v1379 = vsel %vm136, %v1377, 0
    %1381 = vmatprep.subr.bf16.mxu0 0
    %1382 = vmatpush1.bf16.msra.mxu0 %v1004
    %1383 = vmatprep.subr.bf16.mxu0 0
    %1384 = vmatpush1.bf16.msra.mxu0 0
    %1385 = vmatprep.subr.bf16.mxu0 0
    %1386 = vmatpush1.bf16.msra.mxu0 0
    %1387 = vmatprep.subr.bf16.mxu0 0
    %1388 = vmatpush1.bf16.msra.mxu0 0
    %1389 = vmatprep.subr.bf16.mxu0 0
    %1390 = vmatpush1.bf16.msra.mxu0 0
    %1391 = vmatprep.subr.bf16.mxu0 0
    %1392 = vmatpush1.bf16.msra.mxu0 0
    %1393 = vmatprep.subr.bf16.mxu0 0
    %1394 = vmatpush1.bf16.msra.mxu0 0
    %1395 = vmatprep.subr.bf16.mxu0 0
    %1396 = vmatpush1.bf16.msra.mxu0 0
    %1397 = vmatprep.subr.bf16.mxu0 0
    %1398 = vmatpush1.bf16.msra.mxu0 0
    %1399 = vmatprep.subr.bf16.mxu0 0
    %1400 = vmatpush1.bf16.msra.mxu0 0
    %1401 = vmatprep.subr.bf16.mxu0 0
    %1402 = vmatpush1.bf16.msra.mxu0 0
    %1403 = vmatprep.subr.bf16.mxu0 0
    %1404 = vmatpush1.bf16.msra.mxu0 0
    %1405 = vmatprep.subr.bf16.mxu0 0
    %1406 = vmatpush1.bf16.msra.mxu0 0
    %1407 = vmatprep.subr.bf16.mxu0 0
    %1408 = vmatpush1.bf16.msra.mxu0 0
    %1409 = vmatprep.subr.bf16.mxu0 0
    %1410 = vmatpush1.bf16.msra.mxu0 0
    %1411 = vmatprep.subr.bf16.mxu0 0
    %1412 = vmatpush1.bf16.msra.mxu0 0
    %1413 = vmatprep.mubr.bf16.mxu0 0
    %1414 = vmatmul.mubr.bf16.gmra.mrb[0].mxu0 %v1379
    %v1415 = vpop.f32.mrb[0].mxu0
    %v1416 = vadd.f32 0.0, %v1415
    %v1417 = vpop.f32.mrb[0].mxu0
    %v1418 = vpop.f32.mrb[0].mxu0
    %v1419 = vpop.f32.mrb[0].mxu0
    %1420 = vdwg.mxu0
    %v1421 = vadd.f32 %v1326, %v1416
    %1422 = vst.msk [vmem:[#allocation3 + $0x8] sm:$0xff] %vm87, %v1421
    %v1423 = vld [vmem:[#allocation3] sm:$0xff]
    %v1424 = vld [vmem:[#allocation3 + $0x8] sm:$0xff]
    %v1425 = vlaneseq
    %v1426 = vshrl.u32 %v1425, 7
    %v1427 = vsub.s32 2, %v1426
    %v1428 = vrot.slane %v56, %v1427
    %1430 = vrot.lane.b32.xlu0 %v1428, 96
    %v1431 = vpop.permute.xlu0 %1430
    %v1433 = vadd.f32 %v1423, %v1431
    %v1434 = vadd.f32 %v1424, %v1431
    %v1435 = vadd.f32 %v64, %v1433
    %v1436 = vadd.f32 %v65, %v1434
    %v1437 = vsel %vm87, %v1435, 0.0
    %1438 = vadd.xlane.f32.xlu0 %v1437
    %v1439 = vpop.xlane.xlu0 %1438
    %v1440 = vsel %vm87, %v1436, 0.0
    %1441 = vadd.xlane.f32.xlu0 %v1440
    %v1442 = vpop.xlane.xlu0 %1441
    %v1443 = vrcp.pop 32.0
    %v1444 = vmul.f32 %v1439, %v1443
    %v1445 = vmul.f32 %v1442, %v1443
    %v1446 = vsub.f32 %v1435, %v1444
    %v1447 = vsub.f32 %v1436, %v1445
    %v1448 = vmul.f32 %v1446, %v1446
    %v1449 = vmul.f32 %v1447, %v1447
    %v1450 = vsel %vm87, %v1448, 0.0
    %1451 = vadd.xlane.f32.xlu0 %v1450
    %v1452 = vpop.xlane.xlu0 %1451
    %v1453 = vsel %vm87, %v1449, 0.0
    %1454 = vadd.xlane.f32.xlu0 %v1453
    %v1455 = vpop.xlane.xlu0 %1454
    %v1456 = vmul.f32 %v1452, %v1443
    %v1457 = vmul.f32 %v1455, %v1443
    %v1458 = vadd.f32 %v1456, 1e-05
    %v1459 = vadd.f32 %v1457, 1e-05
    %v1460 = vrsqrt.pop %v1458
    %v1461 = vrsqrt.pop %v1459
    %v1462 = vmul.f32 %v1446, %v1460
    %v1463 = vmul.f32 %v1447, %v1461
    %v1464 = vlaneseq
    %v1465 = vshrl.u32 %v1464, 7
    %v1466 = vsub.s32 3, %v1465
    %v1467 = vrot.slane %v56, %v1466
    %1469 = vrot.lane.b32.xlu0 %v1467, 96
    %v1470 = vpop.permute.xlu0 %1469
    %v1472 = vmul.f32 %v1462, %v1470
    %v1473 = vmul.f32 %v1463, %v1470
    %v1474 = vlaneseq
    %v1475 = vshrl.u32 %v1474, 7
    %v1476 = vsub.s32 4, %v1475
    %v1477 = vrot.slane %v56, %v1476
    %1479 = vrot.lane.b32.xlu0 %v1477, 96
    %v1480 = vpop.permute.xlu0 %1479
    %v1482 = vadd.f32 %v1472, %v1480
    %v1483 = vadd.f32 %v1473, %v1480
    %v1484 = vpack.c.bf16 %v1483, %v1482
    %v1485 = vlaneseq
    %v1486 = vshrl.u32 %v1485, 7
    %v1487 = vsub.s32 1, %v1486
    %v1488 = vrot.slane %v56, %v1487
    %v1489 = vunpack.c.h.b16 %v58
    %v1490 = vunpack.c.h.b16 %v59
    %v1491 = vunpack.c.h.b16 %v60
    %v1492 = vunpack.c.h.b16 %v61
    %v1493 = vpack.c.b16 %v1490, %v1489
    %v1494 = vpack.c.b16 %v1492, %v1491
    %1498 = vrot.lane.b32.xlu0 %v1488, 96
    %v1499 = vpop.permute.xlu0 %1498
    %v1502 = vsel %vm87, %v1484, 0
    %1504 = vmatprep.subr.bf16.mxu0 0
    %1505 = vmatpush1.bf16.msra.mxu0 %v1493
    %1506 = vmatprep.subr.bf16.mxu0 0
    %1507 = vmatpush1.bf16.msra.mxu0 %v1494
    %1508 = vmatprep.subr.bf16.mxu0 0
    %1509 = vmatpush1.bf16.msra.mxu0 0
    %1510 = vmatprep.subr.bf16.mxu0 0
    %1511 = vmatpush1.bf16.msra.mxu0 0
    %1512 = vmatprep.subr.bf16.mxu0 0
    %1513 = vmatpush1.bf16.msra.mxu0 0
    %1514 = vmatprep.subr.bf16.mxu0 0
    %1515 = vmatpush1.bf16.msra.mxu0 0
    %1516 = vmatprep.subr.bf16.mxu0 0
    %1517 = vmatpush1.bf16.msra.mxu0 0
    %1518 = vmatprep.subr.bf16.mxu0 0
    %1519 = vmatpush1.bf16.msra.mxu0 0
    %1520 = vmatprep.subr.bf16.mxu0 0
    %1521 = vmatpush1.bf16.msra.mxu0 0
    %1522 = vmatprep.subr.bf16.mxu0 0
    %1523 = vmatpush1.bf16.msra.mxu0 0
    %1524 = vmatprep.subr.bf16.mxu0 0
    %1525 = vmatpush1.bf16.msra.mxu0 0
    %1526 = vmatprep.subr.bf16.mxu0 0
    %1527 = vmatpush1.bf16.msra.mxu0 0
    %1528 = vmatprep.subr.bf16.mxu0 0
    %1529 = vmatpush1.bf16.msra.mxu0 0
    %1530 = vmatprep.subr.bf16.mxu0 0
    %1531 = vmatpush1.bf16.msra.mxu0 0
    %1532 = vmatprep.subr.bf16.mxu0 0
    %1533 = vmatpush1.bf16.msra.mxu0 0
    %1534 = vmatprep.subr.bf16.mxu0 0
    %1535 = vmatpush1.bf16.msra.mxu0 0
    %1536 = vmatprep.mubr.bf16.mxu0 0
    %1537 = vmatmul.mubr.bf16.gmra.mrb[0].mxu0 %v1502
    %v1538 = vpop.f32.mrb[0].mxu0
    %v1539 = vadd.f32 %v1499, %v1538
    %v1540 = vpop.f32.mrb[0].mxu0
    %v1541 = vpop.f32.mrb[0].mxu0
    %v1542 = vadd.f32 %v1499, %v1541
    %v1543 = vpop.f32.mrb[0].mxu0
    %1544 = vdwg.mxu0
    %v1545 = vmax.f32 %v1539, 0.0
    %v1546 = vmax.f32 %v1542, 0.0
    %v1547 = vpack.c.bf16 %v1546, %v1545
    %1549 = vrot.lane.b32.xlu0 %v1547, 96
    %v1550 = vpop.permute.xlu0 %1549
    %1551 = vrot.lane.b32.xlu0 %v1493, 32
    %v1552 = vpop.permute.xlu0 %1551
    %1553 = vrot.lane.b32.xlu0 %v1494, 32
    %v1554 = vpop.permute.xlu0 %1553
    %v1558 = vsel %vm87, %v1550, 0
    %1560 = vmatprep.subr.bf16.mxu0 0
    %1561 = vmatpush1.bf16.msra.mxu0 %v1552
    %1562 = vmatprep.subr.bf16.mxu0 0
    %1563 = vmatpush1.bf16.msra.mxu0 %v1554
    %1564 = vmatprep.subr.bf16.mxu0 0
    %1565 = vmatpush1.bf16.msra.mxu0 0
    %1566 = vmatprep.subr.bf16.mxu0 0
    %1567 = vmatpush1.bf16.msra.mxu0 0
    %1568 = vmatprep.subr.bf16.mxu0 0
    %1569 = vmatpush1.bf16.msra.mxu0 0
    %1570 = vmatprep.subr.bf16.mxu0 0
    %1571 = vmatpush1.bf16.msra.mxu0 0
    %1572 = vmatprep.subr.bf16.mxu0 0
    %1573 = vmatpush1.bf16.msra.mxu0 0
    %1574 = vmatprep.subr.bf16.mxu0 0
    %1575 = vmatpush1.bf16.msra.mxu0 0
    %1576 = vmatprep.subr.bf16.mxu0 0
    %1577 = vmatpush1.bf16.msra.mxu0 0
    %1578 = vmatprep.subr.bf16.mxu0 0
    %1579 = vmatpush1.bf16.msra.mxu0 0
    %1580 = vmatprep.subr.bf16.mxu0 0
    %1581 = vmatpush1.bf16.msra.mxu0 0
    %1582 = vmatprep.subr.bf16.mxu0 0
    %1583 = vmatpush1.bf16.msra.mxu0 0
    %1584 = vmatprep.subr.bf16.mxu0 0
    %1585 = vmatpush1.bf16.msra.mxu0 0
    %1586 = vmatprep.subr.bf16.mxu0 0
    %1587 = vmatpush1.bf16.msra.mxu0 0
    %1588 = vmatprep.subr.bf16.mxu0 0
    %1589 = vmatpush1.bf16.msra.mxu0 0
    %1590 = vmatprep.subr.bf16.mxu0 0
    %1591 = vmatpush1.bf16.msra.mxu0 0
    %1592 = vmatprep.mubr.bf16.mxu0 0
    %1593 = vmatmul.mubr.bf16.gmra.mrb[0].mxu0 %v1558
    %v1594 = vpop.f32.mrb[0].mxu0
    %v1595 = vadd.f32 0.0, %v1594
    %v1596 = vpop.f32.mrb[0].mxu0
    %v1597 = vpop.f32.mrb[0].mxu0
    %v1598 = vadd.f32 0.0, %v1597
    %v1599 = vpop.f32.mrb[0].mxu0
    %1600 = vdwg.mxu0
    %1601 = vrot.lane.b32.xlu0 %v1493, 64
    %v1602 = vpop.permute.xlu0 %1601
    %1603 = vrot.lane.b32.xlu0 %v1494, 64
    %v1604 = vpop.permute.xlu0 %1603
    %v1608 = vsel %vm87, %v1547, 0
    %1610 = vmatprep.subr.bf16.mxu0 0
    %1611 = vmatpush1.bf16.msra.mxu0 %v1602
    %1612 = vmatprep.subr.bf16.mxu0 0
    %1613 = vmatpush1.bf16.msra.mxu0 %v1604
    %1614 = vmatprep.subr.bf16.mxu0 0
    %1615 = vmatpush1.bf16.msra.mxu0 0
    %1616 = vmatprep.subr.bf16.mxu0 0
    %1617 = vmatpush1.bf16.msra.mxu0 0
    %1618 = vmatprep.subr.bf16.mxu0 0
    %1619 = vmatpush1.bf16.msra.mxu0 0
    %1620 = vmatprep.subr.bf16.mxu0 0
    %1621 = vmatpush1.bf16.msra.mxu0 0
    %1622 = vmatprep.subr.bf16.mxu0 0
    %1623 = vmatpush1.bf16.msra.mxu0 0
    %1624 = vmatprep.subr.bf16.mxu0 0
    %1625 = vmatpush1.bf16.msra.mxu0 0
    %1626 = vmatprep.subr.bf16.mxu0 0
    %1627 = vmatpush1.bf16.msra.mxu0 0
    %1628 = vmatprep.subr.bf16.mxu0 0
    %1629 = vmatpush1.bf16.msra.mxu0 0
    %1630 = vmatprep.subr.bf16.mxu0 0
    %1631 = vmatpush1.bf16.msra.mxu0 0
    %1632 = vmatprep.subr.bf16.mxu0 0
    %1633 = vmatpush1.bf16.msra.mxu0 0
    %1634 = vmatprep.subr.bf16.mxu0 0
    %1635 = vmatpush1.bf16.msra.mxu0 0
    %1636 = vmatprep.subr.bf16.mxu0 0
    %1637 = vmatpush1.bf16.msra.mxu0 0
    %1638 = vmatprep.subr.bf16.mxu0 0
    %1639 = vmatpush1.bf16.msra.mxu0 0
    %1640 = vmatprep.subr.bf16.mxu0 0
    %1641 = vmatpush1.bf16.msra.mxu0 0
    %1642 = vmatprep.mubr.bf16.mxu0 0
    %1643 = vmatmul.mubr.bf16.gmra.mrb[0].mxu0 %v1608
    %v1644 = vpop.f32.mrb[0].mxu0
    %v1645 = vadd.f32 %v1595, %v1644
    %v1646 = vpop.f32.mrb[0].mxu0
    %v1647 = vpop.f32.mrb[0].mxu0
    %v1648 = vadd.f32 %v1598, %v1647
    %v1649 = vpop.f32.mrb[0].mxu0
    %1650 = vdwg.mxu0
    %v1651 = vlaneseq
    %v1652 = vshrl.u32 %v1651, 7
    %v1653 = vsub.s32 5, %v1652
    %v1654 = vrot.slane %v56, %v1653
    %1656 = vrot.lane.b32.xlu0 %v1654, 96
    %v1657 = vpop.permute.xlu0 %1656
    %v1659 = vadd.f32 %v1645, %v1657
    %v1660 = vadd.f32 %v1648, %v1657
    %v1661 = vadd.f32 %v1482, %v1659
    %v1662 = vadd.f32 %v1483, %v1660
    %v1663 = vsel %vm87, %v1661, 0.0
    %1664 = vadd.xlane.f32.xlu0 %v1663
    %v1665 = vpop.xlane.xlu0 %1664
    %v1666 = vsel %vm87, %v1662, 0.0
    %1667 = vadd.xlane.f32.xlu0 %v1666
    %v1668 = vpop.xlane.xlu0 %1667
    %v1669 = vmul.f32 %v1665, %v1443
    %v1670 = vmul.f32 %v1668, %v1443
    %v1671 = vsub.f32 %v1661, %v1669
    %v1672 = vsub.f32 %v1662, %v1670
    %v1673 = vmul.f32 %v1671, %v1671
    %v1674 = vmul.f32 %v1672, %v1672
    %v1675 = vsel %vm87, %v1673, 0.0
    %1676 = vadd.xlane.f32.xlu0 %v1675
    %v1677 = vpop.xlane.xlu0 %1676
    %v1678 = vsel %vm87, %v1674, 0.0
    %1679 = vadd.xlane.f32.xlu0 %v1678
    %v1680 = vpop.xlane.xlu0 %1679
    %v1681 = vmul.f32 %v1677, %v1443
    %v1682 = vmul.f32 %v1680, %v1443
    %v1683 = vadd.f32 %v1681, 1e-05
    %v1684 = vadd.f32 %v1682, 1e-05
    %v1685 = vrsqrt.pop %v1683
    %v1686 = vrsqrt.pop %v1684
    %v1687 = vmul.f32 %v1671, %v1685
    %v1688 = vmul.f32 %v1672, %v1686
    %v1689 = vlaneseq
    %v1690 = vshrl.u32 %v1689, 7
    %v1691 = vsub.s32 6, %v1690
    %v1692 = vrot.slane %v56, %v1691
    %1694 = vrot.lane.b32.xlu0 %v1692, 96
    %v1695 = vpop.permute.xlu0 %1694
    %v1697 = vmul.f32 %v1687, %v1695
    %v1698 = vmul.f32 %v1688, %v1695
    %v1699 = vlaneseq
    %v1700 = vshrl.u32 %v1699, 7
    %v1701 = vsub.s32 7, %v1700
    %v1702 = vrot.slane %v56, %v1701
    %1704 = vrot.lane.b32.xlu0 %v1702, 96
    %v1705 = vpop.permute.xlu0 %1704
    %v1707 = vadd.f32 %v1697, %v1705
    %v1708 = vadd.f32 %v1698, %v1705
    %v1709 = vlaneseq
    %v1710 = vshrl.u32 %v1709, 7
    %v1711 = vsub.s32 0, %v1710
    %v1712 = vrot.slane %v57, %v1711
    %1714 = vrot.lane.b32.xlu0 %v1712, 96
    %v1715 = vpop.permute.xlu0 %1714
    %v1717 = vmul.f32 %v1707, %v1715
    %v1718 = vmul.f32 %v1708, %v1715
    %v1719 = vsel %vm87, %v1717, 0.0
    %1720 = vadd.xlane.f32.xlu0 %v1719
    %v1721 = vpop.xlane.xlu0 %1720
    %v1722 = vsel %vm87, %v1718, 0.0
    %1723 = vadd.xlane.f32.xlu0 %v1722
    %v1724 = vpop.xlane.xlu0 %1723
    %v1725 = vrot.slane %v1721, 4
    %v1726 = vadd.f32 %v1721, %v1725
    %v1727 = vrot.slane %v1726, 2
    %v1728 = vadd.f32 %v1726, %v1727
    %v1729 = vrot.slane %v1728, 1
    %v1730 = vadd.f32 %v1728, %v1729
    %v1731 = vmul.f32 %v1730, 0.125
    %v1732 = vrot.slane %v1724, 4
    %v1733 = vadd.f32 %v1724, %v1732
    %v1734 = vrot.slane %v1733, 2
    %v1735 = vadd.f32 %v1733, %v1734
    %v1736 = vrot.slane %v1735, 1
    %v1737 = vadd.f32 %v1735, %v1736
    %v1738 = vmul.f32 %v1737, 0.125
    %vm1739 = vcmask 1040384
    %v1740 = vsel %vm1739, %v1731, %v1738
    %v1741 = vlaneseq
    %v1742 = vshrl.u32 %v1741, 7
    %v1743 = vsub.s32 1, %v1742
    %v1744 = vrot.slane %v57, %v1743
    %1746 = vrot.lane.b32.xlu0 %v1744, 96
    %v1747 = vpop.permute.xlu0 %1746
    %v1749 = vadd.f32 %v1740, %v1747
    %vm1750 = vcmask 1024
    %1751 = vst.msk [vmem:[%s3] sm:$0x3] %vm1750, %v1749
    // Predicated region
    $region26: #{neurallog_forward.1} parent=1 // pred_check
      _
    $region27: #{neurallog_forward.1} parent=1 // pred_check_branch
      %1753 = sbr.rel (0) target = $region29
    $region28: #{neurallog_forward.1} parent=1 // pred_region
      _
    $region29: #{neurallog_forward.1} parent=1 // pred_fallthru
      _
    // Predicated region
    $region30: #{neurallog_forward.1} parent=1 // pred_check
      _
    $region31: #{neurallog_forward.1} parent=1 // pred_check_branch
      %1755 = sbr.rel (0) target = $region33
    $region32: #{neurallog_forward.1} parent=1 // pred_region
      _
    $region33: #{neurallog_forward.1} parent=1 // pred_fallthru
      _
    %1756 = vsyncpa [#allocation5], 1
    %1757 = vsyncpa [#allocation7], 1

</llo_original>
